<compile_context>
chip_gen: v5e
topology: v5e:2x2
jax: 0.10.0
libtpu: 0.0.40
codegen_flags: <defaults>
</compile_context>

<pallas_src>
import jax
import jax.numpy as jnp
from jax import lax
from jax.experimental import pallas as pl
from jax.experimental.pallas import tpu as pltpu

# Deterministic "model" hyperparameters (would come from the wrapped Model).
LENGTHSCALE = 0.5
OUTPUTSCALE = 1.0
NOISE = 1e-4
MEAN_CONST = 0.25
PIVOT_FLOOR = 1e-10

N_BUCKET = 128     # accumulated point count is padded to multiples of this.
UPD_CHUNK = 64     # sublane chunk for the restricted trailing update (multiple of 8).


# ---------------------------------------------------------------------------
# Fused kernel: RBF covariance + jitter + in-place VMEM Cholesky + (mean + L @ eps),
# one batch element per grid step.
# ---------------------------------------------------------------------------
def _gpdraw_fused_kernel(nv_ref, eps_ref, x_ref, xt_ref, y_ref, a_scr):
    b_idx = pl.program_id(0)
    n_valid = nv_ref[0]
    x = x_ref[0].astype(jnp.float32)      # (n_pad, d)  point index on sublanes
    xt = xt_ref[0].astype(jnp.float32)    # (d, n_pad)  point index on lanes
    n, d = x.shape

    row_idx = lax.broadcasted_iota(jnp.int32, (n, 1), 0)   # (n, 1)
    col_idx = lax.broadcasted_iota(jnp.int32, (1, n), 1)   # (1, n)
    eye = row_idx == col_idx                                # (n, n)

    # Pairwise squared distances via VPU broadcast-subtract over the tiny, static
    # feature axis (no gram matmul, no transpose of a row-norm vector).
    d2 = jnp.zeros((n, n), jnp.float32)
    for k in range(d):
        diff = x[:, k:k + 1] - xt[k:k + 1, :]               # (n,1)-(1,n) -> (n,n)
        d2 = d2 + diff * diff
    k_mat = OUTPUTSCALE * jnp.exp((-0.5 / (LENGTHSCALE * LENGTHSCALE)) * d2)

    # Mask padded rows/cols -> identity block there so the Cholesky stays stable.
    row_valid = row_idx < n_valid
    col_valid = col_idx < n_valid
    valid = jnp.logical_and(row_valid, col_valid)
    jitter = jnp.where(row_valid, jnp.float32(NOISE), jnp.float32(1.0))   # (n,1)
    # Matrix stays resident in VMEM scratch for the whole factorization.
    a_scr[...] = jnp.where(valid, k_mat, 0.0) + jnp.where(eye, jitter, 0.0)

    def chol_step(j, y):
        # Row j of the (symmetric) trailing matrix == column j: one dynamic sublane
        # slice instead of full-matrix masked reductions.
        a_row = a_scr[pl.ds(j, 1), :]                                     # (1, n)
        pivot = jnp.sum(jnp.where(col_idx == j, a_row, 0.0),
                        axis=-1, keepdims=True)                           # (1, 1)
        inv = lax.rsqrt(jnp.maximum(pivot, jnp.float32(PIVOT_FLOOR)))     # EUP rsqrt
        lrow = jnp.where(col_idx >= j, a_row, 0.0) * inv                  # L[:, j], lane-major
        # Same data in sublane-major form via an aligned (8,n)->(n,8) XLU transpose
        # (keeps the trailing matrix exactly symmetric).
        lcol = jnp.transpose(jnp.broadcast_to(lrow, (8, n)))[:, 0:1]      # (n, 1)

        # Rank-1 trailing update in place, restricted to not-yet-factored / valid
        # sublane chunks (rows < j and padded rows beyond n_valid are skipped).
        for c0 in range(0, n, UPD_CHUNK):
            c1 = min(c0 + UPD_CHUNK, n)

            @pl.when(jnp.logical_and(j < c1, c0 < n_valid))
            def _(c0=c0, c1=c1):
                a_scr[c0:c1, :] = a_scr[c0:c1, :] - lcol[c0:c1, :] * lrow

        # y = L @ eps accumulated on the fly; eps_j is a scalar SMEM read.
        eps_j = eps_ref[b_idx, j]
        return y + lrow * eps_j

    # y is tiny (n_pad/128 vregs) so it stays in the loop carry; `a` does not.
    y0 = jnp.zeros((1, n), jnp.float32)
    y = lax.fori_loop(0, n_valid, chol_step, y0)

    y_ref[0] = jnp.where(col_valid, MEAN_CONST + y, 0.0)    # lane-dense (1, n_pad)


def _vmem_limit_bytes(n_pad, d):
    # (n,n) f32 scratch + double-buffered x/xt input tiles + double-buffered output.
    need = 4 * (n_pad * n_pad + 2 * (n_pad * d + d * n_pad) + 2 * n_pad)
    # Floor above v5e's 16 MiB scoped default; cap well below v7x's 64 MiB physical.
    return int(min(max(2 * need, 16 * 1024 * 1024), 48 * 1024 * 1024))


@jax.jit
def _gpdraw_fused_call(n_valid, eps_smem, x_pad, xt_pad):
    b, n_pad, d = x_pad.shape
    return pl.pallas_call(
        _gpdraw_fused_kernel,
        out_shape=jax.ShapeDtypeStruct((b, 1, n_pad), jnp.float32),
        grid_spec=pltpu.PrefetchScalarGridSpec(
            num_scalar_prefetch=2,                    # n_valid (i32), eps (f32) -> SMEM
            grid=(b,),
            in_specs=[
                pl.BlockSpec((1, n_pad, d), lambda i, nv, eps: (i, 0, 0)),
                pl.BlockSpec((1, d, n_pad), lambda i, nv, eps: (i, 0, 0)),
            ],
            out_specs=pl.BlockSpec((1, 1, n_pad), lambda i, nv, eps: (i, 0, 0)),
            scratch_shapes=[pltpu.VMEM((n_pad, n_pad), jnp.float32)],
        ),
        compiler_params=pltpu.CompilerParams(
            # Batch axis is parallel so both v7x TensorCores get a batch element each.
            dimension_semantics=("parallel",),
            vmem_limit_bytes=_vmem_limit_bytes(n_pad, d),
        ),
    )(n_valid, eps_smem, x_pad, xt_pad)


# ---------------------------------------------------------------------------
# Stateful wrapper mirroring botorch.utils.gp_sampling.GPDraw.forward
# ---------------------------------------------------------------------------
class GPDraw:
    def __init__(self, seed: int = 0, bucket: int = N_BUCKET):
        self._seed = int(seed)
        self._bucket = int(bucket)
        self._n = 0
        self._x_buf = None      # (b, cap, d)  padded eval points, zero beyond _n
        self._eps_buf = None    # (b, cap)     padded base samples, zero beyond _n
        self._Ys = None

    @property
    def Xs(self):
        if self._x_buf is None:
            return None
        return self._x_buf[:, : self._n, :]

    @property
    def Ys(self):
        return self._Ys

    def __call__(self, X):
        X = jnp.asarray(X, jnp.float32)
        b, n_new, d = X.shape
        n_old, n_total = self._n, self._n + n_new
        cap = ((n_total + self._bucket - 1) // self._bucket) * self._bucket

        # (Re)allocate padded caches; growth happens only at bucket boundaries.
        if self._x_buf is None:
            self._x_buf = jnp.zeros((b, cap, d), jnp.float32)
            self._eps_buf = jnp.zeros((b, cap), jnp.float32)
        elif self._x_buf.shape[1] < cap:
            old_cap = self._x_buf.shape[1]
            self._x_buf = (jnp.zeros((b, cap, d), jnp.float32)
                           .at[:, :old_cap, :].set(self._x_buf))
            self._eps_buf = (jnp.zeros((b, cap), jnp.float32)
                             .at[:, :old_cap].set(self._eps_buf))

        # Append new eval points and fresh base samples (seed, then seed += 1).
        new_eps = jax.random.normal(
            jax.random.PRNGKey(self._seed), (b, n_new), dtype=jnp.float32)
        self._seed += 1
        self._x_buf = self._x_buf.at[:, n_old:n_total, :].set(X)
        self._eps_buf = self._eps_buf.at[:, n_old:n_total].set(new_eps)
        self._n = n_total

        n_valid = jnp.array([n_total], jnp.int32)
        xt = jnp.swapaxes(self._x_buf, 1, 2)                   # (b, d, cap) lane-major
        y_row = _gpdraw_fused_call(n_valid, self._eps_buf, self._x_buf, xt)
        ys = jnp.swapaxes(y_row, 1, 2)[:, :n_total, :]         # (b, n_total, 1)
        self._Ys = ys
        return ys[:, n_old:, :]                                # last n_new rows


if __name__ == "__main__":
    import numpy as np

    B, N, D = 2, 16, 8
    k1, k2 = jax.random.split(jax.random.PRNGKey(0))
    X1 = jax.random.uniform(k1, (B, N, D), dtype=jnp.float32)
    X2 = jax.random.uniform(k2, (B, N, D), dtype=jnp.float32)

    draw = GPDraw(seed=1234)
    Y1 = jax.block_until_ready(draw(X1))
    Y2 = jax.block_until_ready(draw(X2))   # exercises the stateful append path (no recompile)

    assert Y1.shape == (B, N, 1), Y1.shape
    assert Y2.shape == (B, N, 1), Y2.shape
    assert bool(jnp.all(jnp.isfinite(Y1))) and bool(jnp.all(jnp.isfinite(Y2)))

    # Pure-JAX reference over the full accumulated draw (same f32 math).
    xs = draw.Xs                                               # (B, 2N, D)
    eps = draw._eps_buf[:, : xs.shape[1]][..., None]           # (B, 2N, 1)
    diff = xs[:, :, None, :] - xs[:, None, :, :]
    d2 = jnp.sum(diff * diff, axis=-1)
    k_mat = OUTPUTSCALE * jnp.exp(-0.5 * d2 / (LENGTHSCALE * LENGTHSCALE))
    k_mat = k_mat + NOISE * jnp.eye(xs.shape[1], dtype=jnp.float32)[None]
    L = jnp.linalg.cholesky(k_mat)
    y_ref = MEAN_CONST + L @ eps
    np.testing.assert_allclose(np.asarray(draw.Ys), np.asarray(y_ref),
                               rtol=2e-2, atol=2e-2)
    print("KERNEL_OK")
</pallas_src>

<mosaic_0001>
module attributes {stable_mosaic.version = 11 : i64} {
  func.func @_gpdraw_fused_kernel(%arg0: i32, %arg1: memref<1xi32, #tpu.memory_space<smem>>, %arg2: memref<2x128xf32, #tpu.memory_space<smem>>, %arg3: memref<1x128x8xf32, #tpu.memory_space<vmem>>, %arg4: memref<1x8x128xf32, #tpu.memory_space<vmem>>, %arg5: memref<1x1x128xf32, #tpu.memory_space<vmem>>, %arg6: memref<128x128xf32, #tpu.memory_space<vmem>>) attributes {dimension_semantics = [#tpu.dimension_semantics<parallel>], iteration_bounds = array<i64: 2>, scalar_prefetch = 2 : i64, scratch_operands = 1 : i64, tpu.core_type = #tpu.core_type<tc>, window_params = [{transform_indices = @transform_0, window_bounds = array<i64: 1, 128, 8>}, {transform_indices = @transform_1, window_bounds = array<i64: 1, 8, 128>}, {transform_indices = @transform_2, window_bounds = array<i64: 1, 1, 128>}]} {
    %c0 = arith.constant 0 : index
    %0 = memref.load %arg1[%c0] : memref<1xi32, #tpu.memory_space<smem>>
    %c0_0 = arith.constant 0 : index
    %c0_1 = arith.constant 0 : index
    %c0_2 = arith.constant 0 : index
    %1 = vector.load %arg3[%c0_0, %c0_1, %c0_2] : memref<1x128x8xf32, #tpu.memory_space<vmem>>, vector<1x128x8xf32>
    %2 = vector.shape_cast %1 : vector<1x128x8xf32> to vector<128x8xf32>
    %c0_3 = arith.constant 0 : index
    %c0_4 = arith.constant 0 : index
    %c0_5 = arith.constant 0 : index
    %3 = vector.load %arg4[%c0_3, %c0_4, %c0_5] : memref<1x8x128xf32, #tpu.memory_space<vmem>>, vector<1x8x128xf32>
    %4 = vector.shape_cast %3 : vector<1x8x128xf32> to vector<8x128xf32>
    %5 = tpu.iota {dimensions = array<i32: 0>} : vector<128x1xi32>
    %6 = tpu.iota {dimensions = array<i32: 1>} : vector<1x128xi32>
    %7 = vector.broadcast %5 : vector<128x1xi32> to vector<128x128xi32>
    %8 = vector.broadcast %6 : vector<1x128xi32> to vector<128x128xi32>
    %9 = arith.cmpi eq, %7, %8 : vector<128x128xi32>
    %cst = arith.constant 0.000000e+00 : f32
    %10 = vector.broadcast %cst : f32 to vector<128x128xf32>
    %11 = vector.extract_strided_slice %2 {offsets = [0, 0], sizes = [128, 1], strides = [1, 1]} : vector<128x8xf32> to vector<128x1xf32>
    %12 = vector.extract_strided_slice %4 {offsets = [0, 0], sizes = [1, 128], strides = [1, 1]} : vector<8x128xf32> to vector<1x128xf32>
    %13 = vector.broadcast %11 : vector<128x1xf32> to vector<128x128xf32>
    %14 = vector.broadcast %12 : vector<1x128xf32> to vector<128x128xf32>
    %15 = arith.subf %13, %14 : vector<128x128xf32>
    %16 = arith.mulf %15, %15 : vector<128x128xf32>
    %17 = arith.addf %10, %16 : vector<128x128xf32>
    %18 = vector.extract_strided_slice %2 {offsets = [0, 1], sizes = [128, 1], strides = [1, 1]} : vector<128x8xf32> to vector<128x1xf32>
    %19 = vector.extract_strided_slice %4 {offsets = [1, 0], sizes = [1, 128], strides = [1, 1]} : vector<8x128xf32> to vector<1x128xf32>
    %20 = vector.broadcast %18 : vector<128x1xf32> to vector<128x128xf32>
    %21 = vector.broadcast %19 : vector<1x128xf32> to vector<128x128xf32>
    %22 = arith.subf %20, %21 : vector<128x128xf32>
    %23 = arith.mulf %22, %22 : vector<128x128xf32>
    %24 = arith.addf %17, %23 : vector<128x128xf32>
    %25 = vector.extract_strided_slice %2 {offsets = [0, 2], sizes = [128, 1], strides = [1, 1]} : vector<128x8xf32> to vector<128x1xf32>
    %26 = vector.extract_strided_slice %4 {offsets = [2, 0], sizes = [1, 128], strides = [1, 1]} : vector<8x128xf32> to vector<1x128xf32>
    %27 = vector.broadcast %25 : vector<128x1xf32> to vector<128x128xf32>
    %28 = vector.broadcast %26 : vector<1x128xf32> to vector<128x128xf32>
    %29 = arith.subf %27, %28 : vector<128x128xf32>
    %30 = arith.mulf %29, %29 : vector<128x128xf32>
    %31 = arith.addf %24, %30 : vector<128x128xf32>
    %32 = vector.extract_strided_slice %2 {offsets = [0, 3], sizes = [128, 1], strides = [1, 1]} : vector<128x8xf32> to vector<128x1xf32>
    %33 = vector.extract_strided_slice %4 {offsets = [3, 0], sizes = [1, 128], strides = [1, 1]} : vector<8x128xf32> to vector<1x128xf32>
    %34 = vector.broadcast %32 : vector<128x1xf32> to vector<128x128xf32>
    %35 = vector.broadcast %33 : vector<1x128xf32> to vector<128x128xf32>
    %36 = arith.subf %34, %35 : vector<128x128xf32>
    %37 = arith.mulf %36, %36 : vector<128x128xf32>
    %38 = arith.addf %31, %37 : vector<128x128xf32>
    %39 = vector.extract_strided_slice %2 {offsets = [0, 4], sizes = [128, 1], strides = [1, 1]} : vector<128x8xf32> to vector<128x1xf32>
    %40 = vector.extract_strided_slice %4 {offsets = [4, 0], sizes = [1, 128], strides = [1, 1]} : vector<8x128xf32> to vector<1x128xf32>
    %41 = vector.broadcast %39 : vector<128x1xf32> to vector<128x128xf32>
    %42 = vector.broadcast %40 : vector<1x128xf32> to vector<128x128xf32>
    %43 = arith.subf %41, %42 : vector<128x128xf32>
    %44 = arith.mulf %43, %43 : vector<128x128xf32>
    %45 = arith.addf %38, %44 : vector<128x128xf32>
    %46 = vector.extract_strided_slice %2 {offsets = [0, 5], sizes = [128, 1], strides = [1, 1]} : vector<128x8xf32> to vector<128x1xf32>
    %47 = vector.extract_strided_slice %4 {offsets = [5, 0], sizes = [1, 128], strides = [1, 1]} : vector<8x128xf32> to vector<1x128xf32>
    %48 = vector.broadcast %46 : vector<128x1xf32> to vector<128x128xf32>
    %49 = vector.broadcast %47 : vector<1x128xf32> to vector<128x128xf32>
    %50 = arith.subf %48, %49 : vector<128x128xf32>
    %51 = arith.mulf %50, %50 : vector<128x128xf32>
    %52 = arith.addf %45, %51 : vector<128x128xf32>
    %53 = vector.extract_strided_slice %2 {offsets = [0, 6], sizes = [128, 1], strides = [1, 1]} : vector<128x8xf32> to vector<128x1xf32>
    %54 = vector.extract_strided_slice %4 {offsets = [6, 0], sizes = [1, 128], strides = [1, 1]} : vector<8x128xf32> to vector<1x128xf32>
    %55 = vector.broadcast %53 : vector<128x1xf32> to vector<128x128xf32>
    %56 = vector.broadcast %54 : vector<1x128xf32> to vector<128x128xf32>
    %57 = arith.subf %55, %56 : vector<128x128xf32>
    %58 = arith.mulf %57, %57 : vector<128x128xf32>
    %59 = arith.addf %52, %58 : vector<128x128xf32>
    %60 = vector.extract_strided_slice %2 {offsets = [0, 7], sizes = [128, 1], strides = [1, 1]} : vector<128x8xf32> to vector<128x1xf32>
    %61 = vector.extract_strided_slice %4 {offsets = [7, 0], sizes = [1, 128], strides = [1, 1]} : vector<8x128xf32> to vector<1x128xf32>
    %62 = vector.broadcast %60 : vector<128x1xf32> to vector<128x128xf32>
    %63 = vector.broadcast %61 : vector<1x128xf32> to vector<128x128xf32>
    %64 = arith.subf %62, %63 : vector<128x128xf32>
    %65 = arith.mulf %64, %64 : vector<128x128xf32>
    %66 = arith.addf %59, %65 : vector<128x128xf32>
    %cst_6 = arith.constant -2.000000e+00 : f32
    %67 = vector.broadcast %cst_6 : f32 to vector<128x128xf32>
    %68 = arith.mulf %67, %66 : vector<128x128xf32>
    %69 = math.exp %68 : vector<128x128xf32>
    %cst_7 = arith.constant 1.000000e+00 : f32
    %70 = vector.broadcast %cst_7 : f32 to vector<128x128xf32>
    %71 = arith.mulf %70, %69 : vector<128x128xf32>
    %72 = vector.broadcast %0 : i32 to vector<128x1xi32>
    %73 = arith.cmpi slt, %5, %72 : vector<128x1xi32>
    %74 = vector.broadcast %0 : i32 to vector<1x128xi32>
    %75 = arith.cmpi slt, %6, %74 : vector<1x128xi32>
    %76 = vector.broadcast %73 : vector<128x1xi1> to vector<128x128xi1>
    %77 = vector.broadcast %75 : vector<1x128xi1> to vector<128x128xi1>
    %78 = arith.andi %76, %77 : vector<128x128xi1>
    %cst_8 = arith.constant 9.99999974E-5 : f32
    %cst_9 = arith.constant 1.000000e+00 : f32
    %79 = vector.broadcast %cst_8 : f32 to vector<128x1xf32>
    %80 = vector.broadcast %cst_9 : f32 to vector<128x1xf32>
    %81 = arith.select %73, %79, %80 : vector<128x1xi1>, vector<128x1xf32>
    %cst_10 = arith.constant 0.000000e+00 : f32
    %82 = vector.broadcast %cst_10 : f32 to vector<128x128xf32>
    %83 = arith.select %78, %71, %82 : vector<128x128xi1>, vector<128x128xf32>
    %cst_11 = arith.constant 0.000000e+00 : f32
    %84 = vector.shape_cast %81 : vector<128x1xf32> to vector<128x1xf32>
    %85 = vector.broadcast %84 : vector<128x1xf32> to vector<128x128xf32>
    %86 = vector.broadcast %cst_11 : f32 to vector<128x128xf32>
    %87 = arith.select %9, %85, %86 : vector<128x128xi1>, vector<128x128xf32>
    %88 = arith.addf %83, %87 : vector<128x128xf32>
    %c0_12 = arith.constant 0 : index
    %c0_13 = arith.constant 0 : index
    %89 = vector.load %arg6[%c0_12, %c0_13] : memref<128x128xf32, #tpu.memory_space<vmem>>, vector<128x128xf32>
    tpu.vector_store %arg6[%c0_12, %c0_13], %88 {strides = array<i32>} : memref<128x128xf32, #tpu.memory_space<vmem>>, vector<128x128xf32>,
    %cst_14 = arith.constant 0.000000e+00 : f32
    %90 = vector.broadcast %cst_14 : f32 to vector<1x128xf32>
    %c0_i32 = arith.constant 0 : i32
    %91 = arith.subi %0, %c0_i32 : i32
    %92 = arith.addi %c0_i32, %91 : i32
    %c1_i32 = arith.constant 1 : i32
    %93 = scf.for %arg7 = %c0_i32 to %92 step %c1_i32 iter_args(%arg8 = %90) -> (vector<1x128xf32>)  : i32 {
      %101 = arith.index_cast %arg7 : i32 to index
      %c0_20 = arith.constant 0 : index
      %102 = vector.load %arg6[%101, %c0_20] : memref<128x128xf32, #tpu.memory_space<vmem>>, vector<1x128xf32>
      %103 = vector.broadcast %arg7 : i32 to vector<1x128xi32>
      %104 = arith.cmpi eq, %6, %103 : vector<1x128xi32>
      %cst_21 = arith.constant 0.000000e+00 : f32
      %105 = vector.broadcast %cst_21 : f32 to vector<1x128xf32>
      %106 = arith.select %104, %102, %105 : vector<1x128xi1>, vector<1x128xf32>
      %cst_22 = arith.constant dense<0.000000e+00> : vector<1xf32>
      %107 = vector.multi_reduction <add>, %106, %cst_22 [1] : vector<1x128xf32> to vector<1xf32>
      %108 = vector.shape_cast %107 : vector<1xf32> to vector<1x1xf32>
      %cst_23 = arith.constant 1.000000e-10 : f32
      %109 = vector.broadcast %cst_23 : f32 to vector<1x1xf32>
      %110 = arith.maximumf %108, %109 : vector<1x1xf32>
      %111 = math.rsqrt %110 : vector<1x1xf32>
      %112 = vector.broadcast %arg7 : i32 to vector<1x128xi32>
      %113 = arith.cmpi sge, %6, %112 : vector<1x128xi32>
      %cst_24 = arith.constant 0.000000e+00 : f32
      %114 = vector.broadcast %cst_24 : f32 to vector<1x128xf32>
      %115 = arith.select %113, %102, %114 : vector<1x128xi1>, vector<1x128xf32>
      %116 = vector.broadcast %111 : vector<1x1xf32> to vector<1x128xf32>
      %117 = arith.mulf %115, %116 : vector<1x128xf32>
      %118 = vector.shape_cast %117 : vector<1x128xf32> to vector<1x128xf32>
      %119 = vector.broadcast %118 : vector<1x128xf32> to vector<8x128xf32>
      %120 = tpu.transpose %119, [1, 0] : vector<8x128xf32> -> vector<128x8xf32>
      %121 = vector.extract_strided_slice %120 {offsets = [0, 0], sizes = [128, 1], strides = [1, 1]} : vector<128x8xf32> to vector<128x1xf32>
      %c64_i32 = arith.constant 64 : i32
      %122 = arith.cmpi slt, %arg7, %c64_i32 : i32
      %c0_i32_25 = arith.constant 0 : i32
      %123 = arith.cmpi sgt, %0, %c0_i32_25 : i32
      %124 = arith.andi %122, %123 : i1
      %125 = arith.extui %124 : i1 to i32
      %c0_i32_26 = arith.constant 0 : i32
      %126 = arith.cmpi ne, %125, %c0_i32_26 : i32
      scf.if %126 {
        %c0_29 = arith.constant 0 : index
        %c0_30 = arith.constant 0 : index
        %138 = vector.load %arg6[%c0_29, %c0_30] : memref<128x128xf32, #tpu.memory_space<vmem>>, vector<64x128xf32>
        %139 = vector.extract_strided_slice %121 {offsets = [0, 0], sizes = [64, 1], strides = [1, 1]} : vector<128x1xf32> to vector<64x1xf32>
        %140 = vector.broadcast %139 : vector<64x1xf32> to vector<64x128xf32>
        %141 = vector.broadcast %117 : vector<1x128xf32> to vector<64x128xf32>
        %142 = arith.mulf %140, %141 : vector<64x128xf32>
        %143 = arith.subf %138, %142 : vector<64x128xf32>
        %c0_31 = arith.constant 0 : index
        %c0_32 = arith.constant 0 : index
        %144 = vector.load %arg6[%c0_31, %c0_32] : memref<128x128xf32, #tpu.memory_space<vmem>>, vector<64x128xf32>
        tpu.vector_store %arg6[%c0_31, %c0_32], %143 {strides = array<i32>} : memref<128x128xf32, #tpu.memory_space<vmem>>, vector<64x128xf32>,
      } else {
      }
      %c128_i32 = arith.constant 128 : i32
      %127 = arith.cmpi slt, %arg7, %c128_i32 : i32
      %c64_i32_27 = arith.constant 64 : i32
      %128 = arith.cmpi sgt, %0, %c64_i32_27 : i32
      %129 = arith.andi %127, %128 : i1
      %130 = arith.extui %129 : i1 to i32
      %c0_i32_28 = arith.constant 0 : i32
      %131 = arith.cmpi ne, %130, %c0_i32_28 : i32
      scf.if %131 {
        %c64 = arith.constant 64 : index
        %c0_29 = arith.constant 0 : index
        %138 = vector.load %arg6[%c64, %c0_29] : memref<128x128xf32, #tpu.memory_space<vmem>>, vector<64x128xf32>
        %139 = vector.extract_strided_slice %121 {offsets = [64, 0], sizes = [64, 1], strides = [1, 1]} : vector<128x1xf32> to vector<64x1xf32>
        %140 = vector.broadcast %139 : vector<64x1xf32> to vector<64x128xf32>
        %141 = vector.broadcast %117 : vector<1x128xf32> to vector<64x128xf32>
        %142 = arith.mulf %140, %141 : vector<64x128xf32>
        %143 = arith.subf %138, %142 : vector<64x128xf32>
        %c64_30 = arith.constant 64 : index
        %c0_31 = arith.constant 0 : index
        %144 = vector.load %arg6[%c64_30, %c0_31] : memref<128x128xf32, #tpu.memory_space<vmem>>, vector<64x128xf32>
        tpu.vector_store %arg6[%c64_30, %c0_31], %143 {strides = array<i32>} : memref<128x128xf32, #tpu.memory_space<vmem>>, vector<64x128xf32>,
      } else {
      }
      %132 = arith.index_cast %arg0 : i32 to index
      %133 = arith.index_cast %arg7 : i32 to index
      %134 = memref.load %arg2[%132, %133] : memref<2x128xf32, #tpu.memory_space<smem>>
      %135 = vector.broadcast %134 : f32 to vector<1x128xf32>
      %136 = arith.mulf %117, %135 : vector<1x128xf32>
      %137 = arith.addf %arg8, %136 : vector<1x128xf32>
      scf.yield %137 : vector<1x128xf32>
    }
    %cst_15 = arith.constant 2.500000e-01 : f32
    %94 = vector.broadcast %cst_15 : f32 to vector<1x128xf32>
    %95 = arith.addf %94, %93 : vector<1x128xf32>
    %cst_16 = arith.constant 0.000000e+00 : f32
    %96 = vector.broadcast %cst_16 : f32 to vector<1x128xf32>
    %97 = arith.select %75, %95, %96 : vector<1x128xi1>, vector<1x128xf32>
    %c0_17 = arith.constant 0 : index
    %c0_18 = arith.constant 0 : index
    %c0_19 = arith.constant 0 : index
    %98 = vector.load %arg5[%c0_17, %c0_18, %c0_19] : memref<1x1x128xf32, #tpu.memory_space<vmem>>, vector<1x1x128xf32>
    %99 = vector.shape_cast %98 : vector<1x1x128xf32> to vector<1x128xf32>
    %100 = vector.shape_cast %97 : vector<1x128xf32> to vector<1x1x128xf32>
    tpu.vector_store %arg5[%c0_17, %c0_18, %c0_19], %100 {strides = array<i32>} : memref<1x1x128xf32, #tpu.memory_space<vmem>>, vector<1x1x128xf32>,
    return
  }
  func.func @transform_0(%arg0: i32, %arg1: memref<1xi32, #tpu.memory_space<smem>>, %arg2: memref<2x128xf32, #tpu.memory_space<smem>>) -> (i32, i32, i32) {
    %c0_i32 = arith.constant 0 : i32
    %c0_i32_0 = arith.constant 0 : i32
    %c0_i32_1 = arith.constant 0 : i32
    return %arg0, %c0_i32, %c0_i32_0 : i32, i32, i32
  }
  func.func @transform_1(%arg0: i32, %arg1: memref<1xi32, #tpu.memory_space<smem>>, %arg2: memref<2x128xf32, #tpu.memory_space<smem>>) -> (i32, i32, i32) {
    %c0_i32 = arith.constant 0 : i32
    %c0_i32_0 = arith.constant 0 : i32
    %c0_i32_1 = arith.constant 0 : i32
    return %arg0, %c0_i32, %c0_i32_0 : i32, i32, i32
  }
  func.func @transform_2(%arg0: i32, %arg1: memref<1xi32, #tpu.memory_space<smem>>, %arg2: memref<2x128xf32, #tpu.memory_space<smem>>) -> (i32, i32, i32) {
    %c0_i32 = arith.constant 0 : i32
    %c0_i32_0 = arith.constant 0 : i32
    %c0_i32_1 = arith.constant 0 : i32
    return %arg0, %c0_i32, %c0_i32_0 : i32, i32, i32
  }
}

</mosaic_0001>

<llo_original>
// kernel: _gpdraw_fused_call.1
$region0: #{_gpdraw_fused_call.1}
  #allocation0 [shape = 'u32[]', space=smem, size = 0x4, offset = 0x4, fixed_abs, tag = 'smem constant byte address 0x4 - core index']
  #allocation1 [shape = 'u32[72,128]{1,0:T(1,128)}', space=vmem, size = 0x9000, scoped, tag = 'internal scratch']
  #allocation2 [shape = 'f32[128,128]{1,0:T(8,128)}', space=vmem, size = 0x10000, scoped, tag = 'scratch operand']
  #allocation3 [shape = 's32[1]{0}', space=sflag, size = 0x4, scoped, tag = 'scoped memory for _gpdraw_fused_call.1']
  #allocation4 [shape = 's32[1]{0:T(128)S(6)}', space=smem, size = 0x200, scoped, tag = 'prefetched SMEM operand 0']
  #allocation5 [shape = 'u8[1024]{0}', space=smem, size = 0x400, scoped, tag = 'prefetched SMEM operand 1']
  %s0 = inlined_call_operand.<no memory space> [shape: s32[1], index: 0, kind: input, shape index: {}]
  %s1 = inlined_call_operand.vmem [shape: f32[2,128], index: 1, kind: input, shape index: {}]
  %s2 = inlined_call_operand.vmem [shape: f32[2,128,8], index: 2, kind: input, shape index: {}]
  %s3 = inlined_call_operand.vmem [shape: f32[2,8,128], index: 3, kind: input, shape index: {}]
  %s4 = inlined_call_operand.hbm [shape: f32[2,1,128], index: 4, kind: output, shape index: {}]
  %s5 = sld [smem:[#allocation0]]
  $region56: #{_gpdraw_fused_call.1} parent=0
    _
  %s7 = ssub.s32 1, %s5
  %s8 = scalar_select 0, %s7, %s5
  %9 = sst [smem:[#allocation4]] %s0
  %s11 = sshll.u32 %s1, 4
  %s12 = int_to_ptr.vmem [resolvable:$true] %s11
  %14 = dma.vmem_to_smem %s12, 32, [#allocation5], [#allocation3]
  %16 = dma.done [#allocation3], 32
  %17 = sfence
  $region1: #{_gpdraw_fused_call.1} parent=0
    #allocation6 [shape = 'u8[1024]{0}', space=vmem, size = 0x400, scoped, tag = 'output window, operand 0']
    #allocation7 [shape = 's32[2]{0}', space=sflag, size = 0x8, scoped, tag = 'scoped memory for _gpdraw_fused_call.1']
    %18 = vsyncpa [#allocation7], 0
    %s19 = scalar_lea.sflag [#allocation7], 1
    %20 = vsyncpa %s19, 0
    loop: start=0, step=1, limit=4
    $region2: #{_gpdraw_fused_call.1} parent=1 // loop_pre_header
      _
    $region3: #{_gpdraw_fused_call.1} parent=1 // loop_header
      %s22 = sphi 0, %s26
      %p23 = scmp.ge.s32.totalorder %s22, 4
      %s32 = sphi 0, %s34
      %s35 = sphi 0, %s32
      %s36 = sphi 0, %s35
      %s52 = sphi 0, %s36
      %s58 = sphi 0, %s60
      %s61 = sphi 0, %s58
      %s62 = sphi 0, %s61
      %s78 = sphi 0, %s62
      %s84 = sphi 0, %s86
      %s87 = sphi 0, %s84
      %s88 = sphi 0, %s87
      %s104 = sphi 0, %s88
    $region4: #{_gpdraw_fused_call.1} parent=1 // loop_header_branch
      %25 = sbr.rel (%p23) target = $region8
    $region5: #{_gpdraw_fused_call.1} parent=1 // loop_body
      %s27 = ssub.s32 %s22, 1
      %s28 = ssub.s32 %s22, 2
      %s29 = sadd.s32 %s22, 1
      %s30 = ssub.s32 %s22, %s29
      %p31 = scmp.eq.s32.totalorder %s30, 0
      %s33 = sadd.s32 %s32, 1
      %s34 = scalar_select %p31, %s32, %s33
      %p37 = pneg %p31
      %p38 = scmp.eq.s32.totalorder %s22, 1
      %p39 = por %p37, %p38
      %p40 = scmp.ne.s32.totalorder %s32, %s35
      %p41 = scmp.eq.s32.totalorder %s22, 0
      %p42 = por %p40, %p41
      %p43 = scmp.ne.s32.totalorder %s32, %s35
      %p44 = scmp.eq.s32.totalorder %s27, 1
      %p45 = por %p43, %p44
      %p46 = scmp.ne.s32.totalorder %s35, %s36
      %p47 = scmp.eq.s32.totalorder %s27, 0
      %p48 = por %p46, %p47
      %p49 = scmp.ne.s32.totalorder %s35, %s36
      %p50 = scmp.eq.s32.totalorder %s28, 1
      %p51 = por %p49, %p50
      %p53 = scmp.ne.s32.totalorder %s36, %s52
      %p54 = scmp.eq.s32.totalorder %s28, 0
      %p55 = por %p53, %p54
      %s56 = ssub.s32 %s22, %s29
      %p57 = scmp.eq.s32.totalorder %s56, 0
      %s59 = sadd.s32 %s58, 1
      %s60 = scalar_select %p57, %s58, %s59
      %p63 = pneg %p57
      %p64 = scmp.eq.s32.totalorder %s22, 1
      %p65 = por %p63, %p64
      %p66 = scmp.ne.s32.totalorder %s58, %s61
      %p67 = scmp.eq.s32.totalorder %s22, 0
      %p68 = por %p66, %p67
      %p69 = scmp.ne.s32.totalorder %s58, %s61
      %p70 = scmp.eq.s32.totalorder %s27, 1
      %p71 = por %p69, %p70
      %p72 = scmp.ne.s32.totalorder %s61, %s62
      %p73 = scmp.eq.s32.totalorder %s27, 0
      %p74 = por %p72, %p73
      %p75 = scmp.ne.s32.totalorder %s61, %s62
      %p76 = scmp.eq.s32.totalorder %s28, 1
      %p77 = por %p75, %p76
      %p79 = scmp.ne.s32.totalorder %s62, %s78
      %p80 = scmp.eq.s32.totalorder %s28, 0
      %p81 = por %p79, %p80
      %s82 = ssub.s32 %s22, %s29
      %p83 = scmp.eq.s32.totalorder %s82, 0
      %s85 = sadd.s32 %s84, 1
      %s86 = scalar_select %p83, %s84, %s85
      %p89 = pneg %p83
      %p90 = scmp.eq.s32.totalorder %s22, 1
      %p91 = por %p89, %p90
      %p92 = scmp.ne.s32.totalorder %s84, %s87
      %p93 = scmp.eq.s32.totalorder %s22, 0
      %p94 = por %p92, %p93
      %p95 = scmp.ne.s32.totalorder %s84, %s87
      %p96 = scmp.eq.s32.totalorder %s27, 1
      %p97 = por %p95, %p96
      %p98 = scmp.ne.s32.totalorder %s87, %s88
      %p99 = scmp.eq.s32.totalorder %s27, 0
      %p100 = por %p98, %p99
      %p101 = scmp.ne.s32.totalorder %s87, %s88
      %p102 = scmp.eq.s32.totalorder %s28, 1
      %p103 = por %p101, %p102
      %p105 = scmp.ne.s32.totalorder %s88, %s104
      %p106 = scmp.eq.s32.totalorder %s28, 0
      %p107 = por %p105, %p106
      %p108 = scmp.le.s32.totalorder 1, %s22
      %p109 = scmp.lt.s32.totalorder %s22, 3
      %p110 = pnand %p108, %p109
      %p111 = pneg %p110
      // Predicated region
      $region9: #{_gpdraw_fused_call.1} parent=5 // pred_check
        _
      $region10: #{_gpdraw_fused_call.1} parent=5 // pred_check_branch
        %113 = sbr.rel (%p110) target = $region12
      $region11: #{_gpdraw_fused_call.1} parent=5 // pred_region
        %s114 = ssub.s32 %s22, 1
      $region12: #{_gpdraw_fused_call.1} parent=5 // pred_fallthru
        _
      %p115 = scmp.lt.s32.totalorder %s22, 2
      // Predicated region
      $region13: #{_gpdraw_fused_call.1} parent=5 // pred_check
        %p116 = pneg %p115
      $region14: #{_gpdraw_fused_call.1} parent=5 // pred_check_branch
        %118 = sbr.rel (%p116) target = $region16
      $region15: #{_gpdraw_fused_call.1} parent=5 // pred_region
        // Predicated region
        $region17: #{_gpdraw_fused_call.1} parent=15 // pred_check
          %p119 = pneg %p42
        $region18: #{_gpdraw_fused_call.1} parent=15 // pred_check_branch
          %121 = sbr.rel (%p119) target = $region20
        $region19: #{_gpdraw_fused_call.1} parent=15 // pred_region
          %p122 = scmp.lt.s32.totalorder %s22, 1
          %s123 = scalar_select %p122, %s22, 1
          %s124 = smul.addr %s123, 16
          %s125 = smul.addr %s124, 8
          %s126 = scalar_lea.vmem %s2, %s125
        $region20: #{_gpdraw_fused_call.1} parent=15 // pred_fallthru
          _
        // Predicated region
        $region21: #{_gpdraw_fused_call.1} parent=15 // pred_check
          %p127 = pneg %p68
        $region22: #{_gpdraw_fused_call.1} parent=15 // pred_check_branch
          %129 = sbr.rel (%p127) target = $region24
        $region23: #{_gpdraw_fused_call.1} parent=15 // pred_region
          %p130 = scmp.lt.s32.totalorder %s22, 1
          %s131 = scalar_select %p130, %s22, 1
          %s132 = smul.addr %s131, 8
          %s133 = scalar_lea.vmem %s3, %s132
        $region24: #{_gpdraw_fused_call.1} parent=15 // pred_fallthru
          _
      $region16: #{_gpdraw_fused_call.1} parent=5 // pred_fallthru
        _
      %p134 = scmp.le.s32.totalorder 1, %s22
      %p135 = scmp.lt.s32.totalorder %s22, 3
      %p136 = pnand %p134, %p135
      %p137 = pneg %p136
      // Predicated region
      $region25: #{_gpdraw_fused_call.1} parent=5 // pred_check
        _
      $region26: #{_gpdraw_fused_call.1} parent=5 // pred_check_branch
        %139 = sbr.rel (%p136) target = $region28
      $region27: #{_gpdraw_fused_call.1} parent=5 // pred_region
        %s140 = ssub.s32 %s22, 1
        %p141 = scmp.lt.s32.totalorder %s27, 1
        %s142 = scalar_select %p141, %s27, 1
        %s143 = smul.addr %s142, 16
        %s144 = smul.addr %s143, 8
        %s145 = scalar_lea.vmem %s2, %s144
        %p146 = pneg %p48
        %p147 = pneg %p45
        %p148 = scmp.lt.s32.totalorder %s27, 1
        %s149 = scalar_select %p148, %s27, 1
        %s150 = smul.addr %s149, 8
        %s151 = scalar_lea.vmem %s3, %s150
        %p152 = pneg %p74
        %p153 = pneg %p71
        %p154 = pneg %p100
        %p155 = pneg %p97
        %s156 = sand.u32 %s87, 1
        %s157 = scalar_lea.sflag [#allocation7], %s156
        %s158 = sand.u32 %s87, 1
        %s159 = scalar_lea.vmem [#allocation6], %s158
        %p160 = scmp.lt.s32.totalorder %s27, 1
        %s161 = scalar_select %p160, %s27, 1
        %s162 = smul.addr %s161, 16
        %s163 = smul.addr %s162, 8
        %s164 = scalar_lea.vmem %s2, %s163
        %p165 = scmp.lt.s32.totalorder %s27, 1
        %s166 = scalar_select %p165, %s27, 1
        %s167 = smul.addr %s166, 8
        %s168 = scalar_lea.vmem %s3, %s167
        %s169 = sld [smem:[#allocation4]]
        %v170 = vld [vmem:[%s164] sm:$0xff]
        %v171 = vld [vmem:[%s164 + $0x8] sm:$0xff]
        %v172 = vld [vmem:[%s164 + $0x10] sm:$0xff]
        %v173 = vld [vmem:[%s164 + $0x18] sm:$0xff]
        %v174 = vld [vmem:[%s164 + $0x20] sm:$0xff]
        %v175 = vld [vmem:[%s164 + $0x28] sm:$0xff]
        %v176 = vld [vmem:[%s164 + $0x30] sm:$0xff]
        %v177 = vld [vmem:[%s164 + $0x38] sm:$0xff]
        %v178 = vld [vmem:[%s164 + $0x40] sm:$0xff]
        %v179 = vld [vmem:[%s164 + $0x48] sm:$0xff]
        %v180 = vld [vmem:[%s164 + $0x50] sm:$0xff]
        %v181 = vld [vmem:[%s164 + $0x58] sm:$0xff]
        %v182 = vld [vmem:[%s164 + $0x60] sm:$0xff]
        %v183 = vld [vmem:[%s164 + $0x68] sm:$0xff]
        %v184 = vld [vmem:[%s164 + $0x70] sm:$0xff]
        %v185 = vld [vmem:[%s164 + $0x78] sm:$0xff]
        %v186 = vld [vmem:[%s168] sm:$0xff]
        %v187 = vlaneseq
        %v188 = vshrl.u32 %v187, 7
        %v189 = vadd.s32 %v188, 8
        %v190 = vadd.s32 %v188, 16
        %v191 = vadd.s32 %v188, 24
        %v192 = vadd.s32 %v188, 32
        %v193 = vadd.s32 %v188, 40
        %v194 = vadd.s32 %v188, 48
        %v195 = vadd.s32 %v188, 56
        %v196 = vadd.s32 %v188, 64
        %v197 = vadd.s32 %v188, 72
        %v198 = vadd.s32 %v188, 80
        %v199 = vadd.s32 %v188, 88
        %v200 = vadd.s32 %v188, 96
        %v201 = vadd.s32 %v188, 104
        %v202 = vadd.s32 %v188, 112
        %v203 = vadd.s32 %v188, 120
        %v204 = vlaneseq
        %v205 = vand.u32 %v204, 127
        %vm206 = vcmp.eq.s32.totalorder %v188, %v205
        %vm207 = vcmp.eq.s32.totalorder %v189, %v205
        %vm208 = vcmp.eq.s32.totalorder %v190, %v205
        %vm209 = vcmp.eq.s32.totalorder %v191, %v205
        %vm210 = vcmp.eq.s32.totalorder %v192, %v205
        %vm211 = vcmp.eq.s32.totalorder %v193, %v205
        %vm212 = vcmp.eq.s32.totalorder %v194, %v205
        %vm213 = vcmp.eq.s32.totalorder %v195, %v205
        %vm214 = vcmp.eq.s32.totalorder %v196, %v205
        %vm215 = vcmp.eq.s32.totalorder %v197, %v205
        %vm216 = vcmp.eq.s32.totalorder %v198, %v205
        %vm217 = vcmp.eq.s32.totalorder %v199, %v205
        %vm218 = vcmp.eq.s32.totalorder %v200, %v205
        %vm219 = vcmp.eq.s32.totalorder %v201, %v205
        %vm220 = vcmp.eq.s32.totalorder %v202, %v205
        %vm221 = vcmp.eq.s32.totalorder %v203, %v205
        %223 = vset.pattern.permute.xlu0 0
        %224 = vperm.xlu0 %223, %v170
        %v225 = vpop.permute.xlu0 %224
        %228 = vset.pattern.permute.xlu0 0
        %229 = vperm.xlu0 %228, %v171
        %v230 = vpop.permute.xlu0 %229
        %233 = vset.pattern.permute.xlu0 0
        %234 = vperm.xlu0 %233, %v172
        %v235 = vpop.permute.xlu0 %234
        %238 = vset.pattern.permute.xlu0 0
        %239 = vperm.xlu0 %238, %v173
        %v240 = vpop.permute.xlu0 %239
        %243 = vset.pattern.permute.xlu0 0
        %244 = vperm.xlu0 %243, %v174
        %v245 = vpop.permute.xlu0 %244
        %248 = vset.pattern.permute.xlu0 0
        %249 = vperm.xlu0 %248, %v175
        %v250 = vpop.permute.xlu0 %249
        %253 = vset.pattern.permute.xlu0 0
        %254 = vperm.xlu0 %253, %v176
        %v255 = vpop.permute.xlu0 %254
        %258 = vset.pattern.permute.xlu0 0
        %259 = vperm.xlu0 %258, %v177
        %v260 = vpop.permute.xlu0 %259
        %263 = vset.pattern.permute.xlu0 0
        %264 = vperm.xlu0 %263, %v178
        %v265 = vpop.permute.xlu0 %264
        %268 = vset.pattern.permute.xlu0 0
        %269 = vperm.xlu0 %268, %v179
        %v270 = vpop.permute.xlu0 %269
        %273 = vset.pattern.permute.xlu0 0
        %274 = vperm.xlu0 %273, %v180
        %v275 = vpop.permute.xlu0 %274
        %278 = vset.pattern.permute.xlu0 0
        %279 = vperm.xlu0 %278, %v181
        %v280 = vpop.permute.xlu0 %279
        %283 = vset.pattern.permute.xlu0 0
        %284 = vperm.xlu0 %283, %v182
        %v285 = vpop.permute.xlu0 %284
        %288 = vset.pattern.permute.xlu0 0
        %289 = vperm.xlu0 %288, %v183
        %v290 = vpop.permute.xlu0 %289
        %293 = vset.pattern.permute.xlu0 0
        %294 = vperm.xlu0 %293, %v184
        %v295 = vpop.permute.xlu0 %294
        %298 = vset.pattern.permute.xlu0 0
        %299 = vperm.xlu0 %298, %v185
        %v300 = vpop.permute.xlu0 %299
        %v302 = vperm.slane %v186, 0
        %v303 = vsub.f32 %v225, %v302
        %v304 = vsub.f32 %v230, %v302
        %v305 = vsub.f32 %v235, %v302
        %v306 = vsub.f32 %v240, %v302
        %v307 = vsub.f32 %v245, %v302
        %v308 = vsub.f32 %v250, %v302
        %v309 = vsub.f32 %v255, %v302
        %v310 = vsub.f32 %v260, %v302
        %v311 = vsub.f32 %v265, %v302
        %v312 = vsub.f32 %v270, %v302
        %v313 = vsub.f32 %v275, %v302
        %v314 = vsub.f32 %v280, %v302
        %v315 = vsub.f32 %v285, %v302
        %v316 = vsub.f32 %v290, %v302
        %v317 = vsub.f32 %v295, %v302
        %v318 = vsub.f32 %v300, %v302
        %v319 = vmul.f32 %v303, %v303
        %v320 = vmul.f32 %v304, %v304
        %v321 = vmul.f32 %v305, %v305
        %v322 = vmul.f32 %v306, %v306
        %v323 = vmul.f32 %v307, %v307
        %v324 = vmul.f32 %v308, %v308
        %v325 = vmul.f32 %v309, %v309
        %v326 = vmul.f32 %v310, %v310
        %v327 = vmul.f32 %v311, %v311
        %v328 = vmul.f32 %v312, %v312
        %v329 = vmul.f32 %v313, %v313
        %v330 = vmul.f32 %v314, %v314
        %v331 = vmul.f32 %v315, %v315
        %v332 = vmul.f32 %v316, %v316
        %v333 = vmul.f32 %v317, %v317
        %v334 = vmul.f32 %v318, %v318
        %v335 = vadd.f32 %v319, 0.0
        %v336 = vadd.f32 %v320, 0.0
        %v337 = vadd.f32 %v321, 0.0
        %v338 = vadd.f32 %v322, 0.0
        %v339 = vadd.f32 %v323, 0.0
        %v340 = vadd.f32 %v324, 0.0
        %v341 = vadd.f32 %v325, 0.0
        %v342 = vadd.f32 %v326, 0.0
        %v343 = vadd.f32 %v327, 0.0
        %v344 = vadd.f32 %v328, 0.0
        %v345 = vadd.f32 %v329, 0.0
        %v346 = vadd.f32 %v330, 0.0
        %v347 = vadd.f32 %v331, 0.0
        %v348 = vadd.f32 %v332, 0.0
        %v349 = vadd.f32 %v333, 0.0
        %v350 = vadd.f32 %v334, 0.0
        %351 = vset.pattern.permute.xlu0 1
        %352 = vperm.xlu0 %351, %v170
        %v353 = vpop.permute.xlu0 %352
        %355 = vset.pattern.permute.xlu0 1
        %356 = vperm.xlu0 %355, %v171
        %v357 = vpop.permute.xlu0 %356
        %359 = vset.pattern.permute.xlu0 1
        %360 = vperm.xlu0 %359, %v172
        %v361 = vpop.permute.xlu0 %360
        %363 = vset.pattern.permute.xlu0 1
        %364 = vperm.xlu0 %363, %v173
        %v365 = vpop.permute.xlu0 %364
        %367 = vset.pattern.permute.xlu0 1
        %368 = vperm.xlu0 %367, %v174
        %v369 = vpop.permute.xlu0 %368
        %371 = vset.pattern.permute.xlu0 1
        %372 = vperm.xlu0 %371, %v175
        %v373 = vpop.permute.xlu0 %372
        %375 = vset.pattern.permute.xlu0 1
        %376 = vperm.xlu0 %375, %v176
        %v377 = vpop.permute.xlu0 %376
        %379 = vset.pattern.permute.xlu0 1
        %380 = vperm.xlu0 %379, %v177
        %v381 = vpop.permute.xlu0 %380
        %383 = vset.pattern.permute.xlu0 1
        %384 = vperm.xlu0 %383, %v178
        %v385 = vpop.permute.xlu0 %384
        %387 = vset.pattern.permute.xlu0 1
        %388 = vperm.xlu0 %387, %v179
        %v389 = vpop.permute.xlu0 %388
        %391 = vset.pattern.permute.xlu0 1
        %392 = vperm.xlu0 %391, %v180
        %v393 = vpop.permute.xlu0 %392
        %395 = vset.pattern.permute.xlu0 1
        %396 = vperm.xlu0 %395, %v181
        %v397 = vpop.permute.xlu0 %396
        %399 = vset.pattern.permute.xlu0 1
        %400 = vperm.xlu0 %399, %v182
        %v401 = vpop.permute.xlu0 %400
        %403 = vset.pattern.permute.xlu0 1
        %404 = vperm.xlu0 %403, %v183
        %v405 = vpop.permute.xlu0 %404
        %407 = vset.pattern.permute.xlu0 1
        %408 = vperm.xlu0 %407, %v184
        %v409 = vpop.permute.xlu0 %408
        %411 = vset.pattern.permute.xlu0 1
        %412 = vperm.xlu0 %411, %v185
        %v413 = vpop.permute.xlu0 %412
        %v415 = vperm.slane %v186, 1
        %v416 = vsub.f32 %v353, %v415
        %v417 = vsub.f32 %v357, %v415
        %v418 = vsub.f32 %v361, %v415
        %v419 = vsub.f32 %v365, %v415
        %v420 = vsub.f32 %v369, %v415
        %v421 = vsub.f32 %v373, %v415
        %v422 = vsub.f32 %v377, %v415
        %v423 = vsub.f32 %v381, %v415
        %v424 = vsub.f32 %v385, %v415
        %v425 = vsub.f32 %v389, %v415
        %v426 = vsub.f32 %v393, %v415
        %v427 = vsub.f32 %v397, %v415
        %v428 = vsub.f32 %v401, %v415
        %v429 = vsub.f32 %v405, %v415
        %v430 = vsub.f32 %v409, %v415
        %v431 = vsub.f32 %v413, %v415
        %v432 = vmul.f32 %v416, %v416
        %v433 = vmul.f32 %v417, %v417
        %v434 = vmul.f32 %v418, %v418
        %v435 = vmul.f32 %v419, %v419
        %v436 = vmul.f32 %v420, %v420
        %v437 = vmul.f32 %v421, %v421
        %v438 = vmul.f32 %v422, %v422
        %v439 = vmul.f32 %v423, %v423
        %v440 = vmul.f32 %v424, %v424
        %v441 = vmul.f32 %v425, %v425
        %v442 = vmul.f32 %v426, %v426
        %v443 = vmul.f32 %v427, %v427
        %v444 = vmul.f32 %v428, %v428
        %v445 = vmul.f32 %v429, %v429
        %v446 = vmul.f32 %v430, %v430
        %v447 = vmul.f32 %v431, %v431
        %v448 = vadd.f32 %v335, %v432
        %v449 = vadd.f32 %v336, %v433
        %v450 = vadd.f32 %v337, %v434
        %v451 = vadd.f32 %v338, %v435
        %v452 = vadd.f32 %v339, %v436
        %v453 = vadd.f32 %v340, %v437
        %v454 = vadd.f32 %v341, %v438
        %v455 = vadd.f32 %v342, %v439
        %v456 = vadd.f32 %v343, %v440
        %v457 = vadd.f32 %v344, %v441
        %v458 = vadd.f32 %v345, %v442
        %v459 = vadd.f32 %v346, %v443
        %v460 = vadd.f32 %v347, %v444
        %v461 = vadd.f32 %v348, %v445
        %v462 = vadd.f32 %v349, %v446
        %v463 = vadd.f32 %v350, %v447
        %464 = vset.pattern.permute.xlu0 2
        %465 = vperm.xlu0 %464, %v170
        %v466 = vpop.permute.xlu0 %465
        %468 = vset.pattern.permute.xlu0 2
        %469 = vperm.xlu0 %468, %v171
        %v470 = vpop.permute.xlu0 %469
        %472 = vset.pattern.permute.xlu0 2
        %473 = vperm.xlu0 %472, %v172
        %v474 = vpop.permute.xlu0 %473
        %476 = vset.pattern.permute.xlu0 2
        %477 = vperm.xlu0 %476, %v173
        %v478 = vpop.permute.xlu0 %477
        %480 = vset.pattern.permute.xlu0 2
        %481 = vperm.xlu0 %480, %v174
        %v482 = vpop.permute.xlu0 %481
        %484 = vset.pattern.permute.xlu0 2
        %485 = vperm.xlu0 %484, %v175
        %v486 = vpop.permute.xlu0 %485
        %488 = vset.pattern.permute.xlu0 2
        %489 = vperm.xlu0 %488, %v176
        %v490 = vpop.permute.xlu0 %489
        %492 = vset.pattern.permute.xlu0 2
        %493 = vperm.xlu0 %492, %v177
        %v494 = vpop.permute.xlu0 %493
        %496 = vset.pattern.permute.xlu0 2
        %497 = vperm.xlu0 %496, %v178
        %v498 = vpop.permute.xlu0 %497
        %500 = vset.pattern.permute.xlu0 2
        %501 = vperm.xlu0 %500, %v179
        %v502 = vpop.permute.xlu0 %501
        %504 = vset.pattern.permute.xlu0 2
        %505 = vperm.xlu0 %504, %v180
        %v506 = vpop.permute.xlu0 %505
        %508 = vset.pattern.permute.xlu0 2
        %509 = vperm.xlu0 %508, %v181
        %v510 = vpop.permute.xlu0 %509
        %512 = vset.pattern.permute.xlu0 2
        %513 = vperm.xlu0 %512, %v182
        %v514 = vpop.permute.xlu0 %513
        %516 = vset.pattern.permute.xlu0 2
        %517 = vperm.xlu0 %516, %v183
        %v518 = vpop.permute.xlu0 %517
        %520 = vset.pattern.permute.xlu0 2
        %521 = vperm.xlu0 %520, %v184
        %v522 = vpop.permute.xlu0 %521
        %524 = vset.pattern.permute.xlu0 2
        %525 = vperm.xlu0 %524, %v185
        %v526 = vpop.permute.xlu0 %525
        %v528 = vperm.slane %v186, 2
        %v529 = vsub.f32 %v466, %v528
        %v530 = vsub.f32 %v470, %v528
        %v531 = vsub.f32 %v474, %v528
        %v532 = vsub.f32 %v478, %v528
        %v533 = vsub.f32 %v482, %v528
        %v534 = vsub.f32 %v486, %v528
        %v535 = vsub.f32 %v490, %v528
        %v536 = vsub.f32 %v494, %v528
        %v537 = vsub.f32 %v498, %v528
        %v538 = vsub.f32 %v502, %v528
        %v539 = vsub.f32 %v506, %v528
        %v540 = vsub.f32 %v510, %v528
        %v541 = vsub.f32 %v514, %v528
        %v542 = vsub.f32 %v518, %v528
        %v543 = vsub.f32 %v522, %v528
        %v544 = vsub.f32 %v526, %v528
        %v545 = vmul.f32 %v529, %v529
        %v546 = vmul.f32 %v530, %v530
        %v547 = vmul.f32 %v531, %v531
        %v548 = vmul.f32 %v532, %v532
        %v549 = vmul.f32 %v533, %v533
        %v550 = vmul.f32 %v534, %v534
        %v551 = vmul.f32 %v535, %v535
        %v552 = vmul.f32 %v536, %v536
        %v553 = vmul.f32 %v537, %v537
        %v554 = vmul.f32 %v538, %v538
        %v555 = vmul.f32 %v539, %v539
        %v556 = vmul.f32 %v540, %v540
        %v557 = vmul.f32 %v541, %v541
        %v558 = vmul.f32 %v542, %v542
        %v559 = vmul.f32 %v543, %v543
        %v560 = vmul.f32 %v544, %v544
        %v561 = vadd.f32 %v448, %v545
        %v562 = vadd.f32 %v449, %v546
        %v563 = vadd.f32 %v450, %v547
        %v564 = vadd.f32 %v451, %v548
        %v565 = vadd.f32 %v452, %v549
        %v566 = vadd.f32 %v453, %v550
        %v567 = vadd.f32 %v454, %v551
        %v568 = vadd.f32 %v455, %v552
        %v569 = vadd.f32 %v456, %v553
        %v570 = vadd.f32 %v457, %v554
        %v571 = vadd.f32 %v458, %v555
        %v572 = vadd.f32 %v459, %v556
        %v573 = vadd.f32 %v460, %v557
        %v574 = vadd.f32 %v461, %v558
        %v575 = vadd.f32 %v462, %v559
        %v576 = vadd.f32 %v463, %v560
        %577 = vset.pattern.permute.xlu0 3
        %578 = vperm.xlu0 %577, %v170
        %v579 = vpop.permute.xlu0 %578
        %581 = vset.pattern.permute.xlu0 3
        %582 = vperm.xlu0 %581, %v171
        %v583 = vpop.permute.xlu0 %582
        %585 = vset.pattern.permute.xlu0 3
        %586 = vperm.xlu0 %585, %v172
        %v587 = vpop.permute.xlu0 %586
        %589 = vset.pattern.permute.xlu0 3
        %590 = vperm.xlu0 %589, %v173
        %v591 = vpop.permute.xlu0 %590
        %593 = vset.pattern.permute.xlu0 3
        %594 = vperm.xlu0 %593, %v174
        %v595 = vpop.permute.xlu0 %594
        %597 = vset.pattern.permute.xlu0 3
        %598 = vperm.xlu0 %597, %v175
        %v599 = vpop.permute.xlu0 %598
        %601 = vset.pattern.permute.xlu0 3
        %602 = vperm.xlu0 %601, %v176
        %v603 = vpop.permute.xlu0 %602
        %605 = vset.pattern.permute.xlu0 3
        %606 = vperm.xlu0 %605, %v177
        %v607 = vpop.permute.xlu0 %606
        %609 = vset.pattern.permute.xlu0 3
        %610 = vperm.xlu0 %609, %v178
        %v611 = vpop.permute.xlu0 %610
        %613 = vset.pattern.permute.xlu0 3
        %614 = vperm.xlu0 %613, %v179
        %v615 = vpop.permute.xlu0 %614
        %617 = vset.pattern.permute.xlu0 3
        %618 = vperm.xlu0 %617, %v180
        %v619 = vpop.permute.xlu0 %618
        %621 = vset.pattern.permute.xlu0 3
        %622 = vperm.xlu0 %621, %v181
        %v623 = vpop.permute.xlu0 %622
        %625 = vset.pattern.permute.xlu0 3
        %626 = vperm.xlu0 %625, %v182
        %v627 = vpop.permute.xlu0 %626
        %629 = vset.pattern.permute.xlu0 3
        %630 = vperm.xlu0 %629, %v183
        %v631 = vpop.permute.xlu0 %630
        %633 = vset.pattern.permute.xlu0 3
        %634 = vperm.xlu0 %633, %v184
        %v635 = vpop.permute.xlu0 %634
        %637 = vset.pattern.permute.xlu0 3
        %638 = vperm.xlu0 %637, %v185
        %v639 = vpop.permute.xlu0 %638
        %v641 = vperm.slane %v186, 3
        %v642 = vsub.f32 %v579, %v641
        %v643 = vsub.f32 %v583, %v641
        %v644 = vsub.f32 %v587, %v641
        %v645 = vsub.f32 %v591, %v641
        %v646 = vsub.f32 %v595, %v641
        %v647 = vsub.f32 %v599, %v641
        %v648 = vsub.f32 %v603, %v641
        %v649 = vsub.f32 %v607, %v641
        %v650 = vsub.f32 %v611, %v641
        %v651 = vsub.f32 %v615, %v641
        %v652 = vsub.f32 %v619, %v641
        %v653 = vsub.f32 %v623, %v641
        %v654 = vsub.f32 %v627, %v641
        %v655 = vsub.f32 %v631, %v641
        %v656 = vsub.f32 %v635, %v641
        %v657 = vsub.f32 %v639, %v641
        %v658 = vmul.f32 %v642, %v642
        %v659 = vmul.f32 %v643, %v643
        %v660 = vmul.f32 %v644, %v644
        %v661 = vmul.f32 %v645, %v645
        %v662 = vmul.f32 %v646, %v646
        %v663 = vmul.f32 %v647, %v647
        %v664 = vmul.f32 %v648, %v648
        %v665 = vmul.f32 %v649, %v649
        %v666 = vmul.f32 %v650, %v650
        %v667 = vmul.f32 %v651, %v651
        %v668 = vmul.f32 %v652, %v652
        %v669 = vmul.f32 %v653, %v653
        %v670 = vmul.f32 %v654, %v654
        %v671 = vmul.f32 %v655, %v655
        %v672 = vmul.f32 %v656, %v656
        %v673 = vmul.f32 %v657, %v657
        %v674 = vadd.f32 %v561, %v658
        %v675 = vadd.f32 %v562, %v659
        %v676 = vadd.f32 %v563, %v660
        %v677 = vadd.f32 %v564, %v661
        %v678 = vadd.f32 %v565, %v662
        %v679 = vadd.f32 %v566, %v663
        %v680 = vadd.f32 %v567, %v664
        %v681 = vadd.f32 %v568, %v665
        %v682 = vadd.f32 %v569, %v666
        %v683 = vadd.f32 %v570, %v667
        %v684 = vadd.f32 %v571, %v668
        %v685 = vadd.f32 %v572, %v669
        %v686 = vadd.f32 %v573, %v670
        %v687 = vadd.f32 %v574, %v671
        %v688 = vadd.f32 %v575, %v672
        %v689 = vadd.f32 %v576, %v673
        %690 = vset.pattern.permute.xlu0 4
        %691 = vperm.xlu0 %690, %v170
        %v692 = vpop.permute.xlu0 %691
        %694 = vset.pattern.permute.xlu0 4
        %695 = vperm.xlu0 %694, %v171
        %v696 = vpop.permute.xlu0 %695
        %698 = vset.pattern.permute.xlu0 4
        %699 = vperm.xlu0 %698, %v172
        %v700 = vpop.permute.xlu0 %699
        %702 = vset.pattern.permute.xlu0 4
        %703 = vperm.xlu0 %702, %v173
        %v704 = vpop.permute.xlu0 %703
        %706 = vset.pattern.permute.xlu0 4
        %707 = vperm.xlu0 %706, %v174
        %v708 = vpop.permute.xlu0 %707
        %710 = vset.pattern.permute.xlu0 4
        %711 = vperm.xlu0 %710, %v175
        %v712 = vpop.permute.xlu0 %711
        %714 = vset.pattern.permute.xlu0 4
        %715 = vperm.xlu0 %714, %v176
        %v716 = vpop.permute.xlu0 %715
        %718 = vset.pattern.permute.xlu0 4
        %719 = vperm.xlu0 %718, %v177
        %v720 = vpop.permute.xlu0 %719
        %722 = vset.pattern.permute.xlu0 4
        %723 = vperm.xlu0 %722, %v178
        %v724 = vpop.permute.xlu0 %723
        %726 = vset.pattern.permute.xlu0 4
        %727 = vperm.xlu0 %726, %v179
        %v728 = vpop.permute.xlu0 %727
        %730 = vset.pattern.permute.xlu0 4
        %731 = vperm.xlu0 %730, %v180
        %v732 = vpop.permute.xlu0 %731
        %734 = vset.pattern.permute.xlu0 4
        %735 = vperm.xlu0 %734, %v181
        %v736 = vpop.permute.xlu0 %735
        %738 = vset.pattern.permute.xlu0 4
        %739 = vperm.xlu0 %738, %v182
        %v740 = vpop.permute.xlu0 %739
        %742 = vset.pattern.permute.xlu0 4
        %743 = vperm.xlu0 %742, %v183
        %v744 = vpop.permute.xlu0 %743
        %746 = vset.pattern.permute.xlu0 4
        %747 = vperm.xlu0 %746, %v184
        %v748 = vpop.permute.xlu0 %747
        %750 = vset.pattern.permute.xlu0 4
        %751 = vperm.xlu0 %750, %v185
        %v752 = vpop.permute.xlu0 %751
        %v754 = vperm.slane %v186, 4
        %v755 = vsub.f32 %v692, %v754
        %v756 = vsub.f32 %v696, %v754
        %v757 = vsub.f32 %v700, %v754
        %v758 = vsub.f32 %v704, %v754
        %v759 = vsub.f32 %v708, %v754
        %v760 = vsub.f32 %v712, %v754
        %v761 = vsub.f32 %v716, %v754
        %v762 = vsub.f32 %v720, %v754
        %v763 = vsub.f32 %v724, %v754
        %v764 = vsub.f32 %v728, %v754
        %v765 = vsub.f32 %v732, %v754
        %v766 = vsub.f32 %v736, %v754
        %v767 = vsub.f32 %v740, %v754
        %v768 = vsub.f32 %v744, %v754
        %v769 = vsub.f32 %v748, %v754
        %v770 = vsub.f32 %v752, %v754
        %v771 = vmul.f32 %v755, %v755
        %v772 = vmul.f32 %v756, %v756
        %v773 = vmul.f32 %v757, %v757
        %v774 = vmul.f32 %v758, %v758
        %v775 = vmul.f32 %v759, %v759
        %v776 = vmul.f32 %v760, %v760
        %v777 = vmul.f32 %v761, %v761
        %v778 = vmul.f32 %v762, %v762
        %v779 = vmul.f32 %v763, %v763
        %v780 = vmul.f32 %v764, %v764
        %v781 = vmul.f32 %v765, %v765
        %v782 = vmul.f32 %v766, %v766
        %v783 = vmul.f32 %v767, %v767
        %v784 = vmul.f32 %v768, %v768
        %v785 = vmul.f32 %v769, %v769
        %v786 = vmul.f32 %v770, %v770
        %v787 = vadd.f32 %v674, %v771
        %v788 = vadd.f32 %v675, %v772
        %v789 = vadd.f32 %v676, %v773
        %v790 = vadd.f32 %v677, %v774
        %v791 = vadd.f32 %v678, %v775
        %v792 = vadd.f32 %v679, %v776
        %v793 = vadd.f32 %v680, %v777
        %v794 = vadd.f32 %v681, %v778
        %v795 = vadd.f32 %v682, %v779
        %v796 = vadd.f32 %v683, %v780
        %v797 = vadd.f32 %v684, %v781
        %v798 = vadd.f32 %v685, %v782
        %v799 = vadd.f32 %v686, %v783
        %v800 = vadd.f32 %v687, %v784
        %v801 = vadd.f32 %v688, %v785
        %v802 = vadd.f32 %v689, %v786
        %803 = vset.pattern.permute.xlu0 5
        %804 = vperm.xlu0 %803, %v170
        %v805 = vpop.permute.xlu0 %804
        %807 = vset.pattern.permute.xlu0 5
        %808 = vperm.xlu0 %807, %v171
        %v809 = vpop.permute.xlu0 %808
        %811 = vset.pattern.permute.xlu0 5
        %812 = vperm.xlu0 %811, %v172
        %v813 = vpop.permute.xlu0 %812
        %815 = vset.pattern.permute.xlu0 5
        %816 = vperm.xlu0 %815, %v173
        %v817 = vpop.permute.xlu0 %816
        %819 = vset.pattern.permute.xlu0 5
        %820 = vperm.xlu0 %819, %v174
        %v821 = vpop.permute.xlu0 %820
        %823 = vset.pattern.permute.xlu0 5
        %824 = vperm.xlu0 %823, %v175
        %v825 = vpop.permute.xlu0 %824
        %827 = vset.pattern.permute.xlu0 5
        %828 = vperm.xlu0 %827, %v176
        %v829 = vpop.permute.xlu0 %828
        %831 = vset.pattern.permute.xlu0 5
        %832 = vperm.xlu0 %831, %v177
        %v833 = vpop.permute.xlu0 %832
        %835 = vset.pattern.permute.xlu0 5
        %836 = vperm.xlu0 %835, %v178
        %v837 = vpop.permute.xlu0 %836
        %839 = vset.pattern.permute.xlu0 5
        %840 = vperm.xlu0 %839, %v179
        %v841 = vpop.permute.xlu0 %840
        %843 = vset.pattern.permute.xlu0 5
        %844 = vperm.xlu0 %843, %v180
        %v845 = vpop.permute.xlu0 %844
        %847 = vset.pattern.permute.xlu0 5
        %848 = vperm.xlu0 %847, %v181
        %v849 = vpop.permute.xlu0 %848
        %851 = vset.pattern.permute.xlu0 5
        %852 = vperm.xlu0 %851, %v182
        %v853 = vpop.permute.xlu0 %852
        %855 = vset.pattern.permute.xlu0 5
        %856 = vperm.xlu0 %855, %v183
        %v857 = vpop.permute.xlu0 %856
        %859 = vset.pattern.permute.xlu0 5
        %860 = vperm.xlu0 %859, %v184
        %v861 = vpop.permute.xlu0 %860
        %863 = vset.pattern.permute.xlu0 5
        %864 = vperm.xlu0 %863, %v185
        %v865 = vpop.permute.xlu0 %864
        %v867 = vperm.slane %v186, 5
        %v868 = vsub.f32 %v805, %v867
        %v869 = vsub.f32 %v809, %v867
        %v870 = vsub.f32 %v813, %v867
        %v871 = vsub.f32 %v817, %v867
        %v872 = vsub.f32 %v821, %v867
        %v873 = vsub.f32 %v825, %v867
        %v874 = vsub.f32 %v829, %v867
        %v875 = vsub.f32 %v833, %v867
        %v876 = vsub.f32 %v837, %v867
        %v877 = vsub.f32 %v841, %v867
        %v878 = vsub.f32 %v845, %v867
        %v879 = vsub.f32 %v849, %v867
        %v880 = vsub.f32 %v853, %v867
        %v881 = vsub.f32 %v857, %v867
        %v882 = vsub.f32 %v861, %v867
        %v883 = vsub.f32 %v865, %v867
        %v884 = vmul.f32 %v868, %v868
        %v885 = vmul.f32 %v869, %v869
        %v886 = vmul.f32 %v870, %v870
        %v887 = vmul.f32 %v871, %v871
        %v888 = vmul.f32 %v872, %v872
        %v889 = vmul.f32 %v873, %v873
        %v890 = vmul.f32 %v874, %v874
        %v891 = vmul.f32 %v875, %v875
        %v892 = vmul.f32 %v876, %v876
        %v893 = vmul.f32 %v877, %v877
        %v894 = vmul.f32 %v878, %v878
        %v895 = vmul.f32 %v879, %v879
        %v896 = vmul.f32 %v880, %v880
        %v897 = vmul.f32 %v881, %v881
        %v898 = vmul.f32 %v882, %v882
        %v899 = vmul.f32 %v883, %v883
        %v900 = vadd.f32 %v787, %v884
        %v901 = vadd.f32 %v788, %v885
        %v902 = vadd.f32 %v789, %v886
        %v903 = vadd.f32 %v790, %v887
        %v904 = vadd.f32 %v791, %v888
        %v905 = vadd.f32 %v792, %v889
        %v906 = vadd.f32 %v793, %v890
        %v907 = vadd.f32 %v794, %v891
        %v908 = vadd.f32 %v795, %v892
        %v909 = vadd.f32 %v796, %v893
        %v910 = vadd.f32 %v797, %v894
        %v911 = vadd.f32 %v798, %v895
        %v912 = vadd.f32 %v799, %v896
        %v913 = vadd.f32 %v800, %v897
        %v914 = vadd.f32 %v801, %v898
        %v915 = vadd.f32 %v802, %v899
        %916 = vset.pattern.permute.xlu0 6
        %917 = vperm.xlu0 %916, %v170
        %v918 = vpop.permute.xlu0 %917
        %920 = vset.pattern.permute.xlu0 6
        %921 = vperm.xlu0 %920, %v171
        %v922 = vpop.permute.xlu0 %921
        %924 = vset.pattern.permute.xlu0 6
        %925 = vperm.xlu0 %924, %v172
        %v926 = vpop.permute.xlu0 %925
        %928 = vset.pattern.permute.xlu0 6
        %929 = vperm.xlu0 %928, %v173
        %v930 = vpop.permute.xlu0 %929
        %932 = vset.pattern.permute.xlu0 6
        %933 = vperm.xlu0 %932, %v174
        %v934 = vpop.permute.xlu0 %933
        %936 = vset.pattern.permute.xlu0 6
        %937 = vperm.xlu0 %936, %v175
        %v938 = vpop.permute.xlu0 %937
        %940 = vset.pattern.permute.xlu0 6
        %941 = vperm.xlu0 %940, %v176
        %v942 = vpop.permute.xlu0 %941
        %944 = vset.pattern.permute.xlu0 6
        %945 = vperm.xlu0 %944, %v177
        %v946 = vpop.permute.xlu0 %945
        %948 = vset.pattern.permute.xlu0 6
        %949 = vperm.xlu0 %948, %v178
        %v950 = vpop.permute.xlu0 %949
        %952 = vset.pattern.permute.xlu0 6
        %953 = vperm.xlu0 %952, %v179
        %v954 = vpop.permute.xlu0 %953
        %956 = vset.pattern.permute.xlu0 6
        %957 = vperm.xlu0 %956, %v180
        %v958 = vpop.permute.xlu0 %957
        %960 = vset.pattern.permute.xlu0 6
        %961 = vperm.xlu0 %960, %v181
        %v962 = vpop.permute.xlu0 %961
        %964 = vset.pattern.permute.xlu0 6
        %965 = vperm.xlu0 %964, %v182
        %v966 = vpop.permute.xlu0 %965
        %968 = vset.pattern.permute.xlu0 6
        %969 = vperm.xlu0 %968, %v183
        %v970 = vpop.permute.xlu0 %969
        %972 = vset.pattern.permute.xlu0 6
        %973 = vperm.xlu0 %972, %v184
        %v974 = vpop.permute.xlu0 %973
        %976 = vset.pattern.permute.xlu0 6
        %977 = vperm.xlu0 %976, %v185
        %v978 = vpop.permute.xlu0 %977
        %v980 = vperm.slane %v186, 6
        %v981 = vsub.f32 %v918, %v980
        %v982 = vsub.f32 %v922, %v980
        %v983 = vsub.f32 %v926, %v980
        %v984 = vsub.f32 %v930, %v980
        %v985 = vsub.f32 %v934, %v980
        %v986 = vsub.f32 %v938, %v980
        %v987 = vsub.f32 %v942, %v980
        %v988 = vsub.f32 %v946, %v980
        %v989 = vsub.f32 %v950, %v980
        %v990 = vsub.f32 %v954, %v980
        %v991 = vsub.f32 %v958, %v980
        %v992 = vsub.f32 %v962, %v980
        %v993 = vsub.f32 %v966, %v980
        %v994 = vsub.f32 %v970, %v980
        %v995 = vsub.f32 %v974, %v980
        %v996 = vsub.f32 %v978, %v980
        %v997 = vmul.f32 %v981, %v981
        %v998 = vmul.f32 %v982, %v982
        %v999 = vmul.f32 %v983, %v983
        %v1000 = vmul.f32 %v984, %v984
        %v1001 = vmul.f32 %v985, %v985
        %v1002 = vmul.f32 %v986, %v986
        %v1003 = vmul.f32 %v987, %v987
        %v1004 = vmul.f32 %v988, %v988
        %v1005 = vmul.f32 %v989, %v989
        %v1006 = vmul.f32 %v990, %v990
        %v1007 = vmul.f32 %v991, %v991
        %v1008 = vmul.f32 %v992, %v992
        %v1009 = vmul.f32 %v993, %v993
        %v1010 = vmul.f32 %v994, %v994
        %v1011 = vmul.f32 %v995, %v995
        %v1012 = vmul.f32 %v996, %v996
        %v1013 = vadd.f32 %v900, %v997
        %v1014 = vadd.f32 %v901, %v998
        %v1015 = vadd.f32 %v902, %v999
        %v1016 = vadd.f32 %v903, %v1000
        %v1017 = vadd.f32 %v904, %v1001
        %v1018 = vadd.f32 %v905, %v1002
        %v1019 = vadd.f32 %v906, %v1003
        %v1020 = vadd.f32 %v907, %v1004
        %v1021 = vadd.f32 %v908, %v1005
        %v1022 = vadd.f32 %v909, %v1006
        %v1023 = vadd.f32 %v910, %v1007
        %v1024 = vadd.f32 %v911, %v1008
        %v1025 = vadd.f32 %v912, %v1009
        %v1026 = vadd.f32 %v913, %v1010
        %v1027 = vadd.f32 %v914, %v1011
        %v1028 = vadd.f32 %v915, %v1012
        %1029 = vset.pattern.permute.xlu0 7
        %1030 = vperm.xlu0 %1029, %v170
        %v1031 = vpop.permute.xlu0 %1030
        %1033 = vset.pattern.permute.xlu0 7
        %1034 = vperm.xlu0 %1033, %v171
        %v1035 = vpop.permute.xlu0 %1034
        %1037 = vset.pattern.permute.xlu0 7
        %1038 = vperm.xlu0 %1037, %v172
        %v1039 = vpop.permute.xlu0 %1038
        %1041 = vset.pattern.permute.xlu0 7
        %1042 = vperm.xlu0 %1041, %v173
        %v1043 = vpop.permute.xlu0 %1042
        %1045 = vset.pattern.permute.xlu0 7
        %1046 = vperm.xlu0 %1045, %v174
        %v1047 = vpop.permute.xlu0 %1046
        %1049 = vset.pattern.permute.xlu0 7
        %1050 = vperm.xlu0 %1049, %v175
        %v1051 = vpop.permute.xlu0 %1050
        %1053 = vset.pattern.permute.xlu0 7
        %1054 = vperm.xlu0 %1053, %v176
        %v1055 = vpop.permute.xlu0 %1054
        %1057 = vset.pattern.permute.xlu0 7
        %1058 = vperm.xlu0 %1057, %v177
        %v1059 = vpop.permute.xlu0 %1058
        %1061 = vset.pattern.permute.xlu0 7
        %1062 = vperm.xlu0 %1061, %v178
        %v1063 = vpop.permute.xlu0 %1062
        %1065 = vset.pattern.permute.xlu0 7
        %1066 = vperm.xlu0 %1065, %v179
        %v1067 = vpop.permute.xlu0 %1066
        %1069 = vset.pattern.permute.xlu0 7
        %1070 = vperm.xlu0 %1069, %v180
        %v1071 = vpop.permute.xlu0 %1070
        %1073 = vset.pattern.permute.xlu0 7
        %1074 = vperm.xlu0 %1073, %v181
        %v1075 = vpop.permute.xlu0 %1074
        %1077 = vset.pattern.permute.xlu0 7
        %1078 = vperm.xlu0 %1077, %v182
        %v1079 = vpop.permute.xlu0 %1078
        %1081 = vset.pattern.permute.xlu0 7
        %1082 = vperm.xlu0 %1081, %v183
        %v1083 = vpop.permute.xlu0 %1082
        %1085 = vset.pattern.permute.xlu0 7
        %1086 = vperm.xlu0 %1085, %v184
        %v1087 = vpop.permute.xlu0 %1086
        %1089 = vset.pattern.permute.xlu0 7
        %1090 = vperm.xlu0 %1089, %v185
        %v1091 = vpop.permute.xlu0 %1090
        %v1093 = vperm.slane %v186, 7
        %v1094 = vsub.f32 %v1031, %v1093
        %v1095 = vsub.f32 %v1035, %v1093
        %v1096 = vsub.f32 %v1039, %v1093
        %v1097 = vsub.f32 %v1043, %v1093
        %v1098 = vsub.f32 %v1047, %v1093
        %v1099 = vsub.f32 %v1051, %v1093
        %v1100 = vsub.f32 %v1055, %v1093
        %v1101 = vsub.f32 %v1059, %v1093
        %v1102 = vsub.f32 %v1063, %v1093
        %v1103 = vsub.f32 %v1067, %v1093
        %v1104 = vsub.f32 %v1071, %v1093
        %v1105 = vsub.f32 %v1075, %v1093
        %v1106 = vsub.f32 %v1079, %v1093
        %v1107 = vsub.f32 %v1083, %v1093
        %v1108 = vsub.f32 %v1087, %v1093
        %v1109 = vsub.f32 %v1091, %v1093
        %v1110 = vmul.f32 %v1094, %v1094
        %v1111 = vmul.f32 %v1095, %v1095
        %v1112 = vmul.f32 %v1096, %v1096
        %v1113 = vmul.f32 %v1097, %v1097
        %v1114 = vmul.f32 %v1098, %v1098
        %v1115 = vmul.f32 %v1099, %v1099
        %v1116 = vmul.f32 %v1100, %v1100
        %v1117 = vmul.f32 %v1101, %v1101
        %v1118 = vmul.f32 %v1102, %v1102
        %v1119 = vmul.f32 %v1103, %v1103
        %v1120 = vmul.f32 %v1104, %v1104
        %v1121 = vmul.f32 %v1105, %v1105
        %v1122 = vmul.f32 %v1106, %v1106
        %v1123 = vmul.f32 %v1107, %v1107
        %v1124 = vmul.f32 %v1108, %v1108
        %v1125 = vmul.f32 %v1109, %v1109
        %v1126 = vadd.f32 %v1013, %v1110
        %v1127 = vadd.f32 %v1014, %v1111
        %v1128 = vadd.f32 %v1015, %v1112
        %v1129 = vadd.f32 %v1016, %v1113
        %v1130 = vadd.f32 %v1017, %v1114
        %v1131 = vadd.f32 %v1018, %v1115
        %v1132 = vadd.f32 %v1019, %v1116
        %v1133 = vadd.f32 %v1020, %v1117
        %v1134 = vadd.f32 %v1021, %v1118
        %v1135 = vadd.f32 %v1022, %v1119
        %v1136 = vadd.f32 %v1023, %v1120
        %v1137 = vadd.f32 %v1024, %v1121
        %v1138 = vadd.f32 %v1025, %v1122
        %v1139 = vadd.f32 %v1026, %v1123
        %v1140 = vadd.f32 %v1027, %v1124
        %v1141 = vadd.f32 %v1028, %v1125
        %v1142 = vmul.f32 %v1126, -2.0
        %v1143 = vmul.f32 %v1127, -2.0
        %v1144 = vmul.f32 %v1128, -2.0
        %v1145 = vmul.f32 %v1129, -2.0
        %v1146 = vmul.f32 %v1130, -2.0
        %v1147 = vmul.f32 %v1131, -2.0
        %v1148 = vmul.f32 %v1132, -2.0
        %v1149 = vmul.f32 %v1133, -2.0
        %v1150 = vmul.f32 %v1134, -2.0
        %v1151 = vmul.f32 %v1135, -2.0
        %v1152 = vmul.f32 %v1136, -2.0
        %v1153 = vmul.f32 %v1137, -2.0
        %v1154 = vmul.f32 %v1138, -2.0
        %v1155 = vmul.f32 %v1139, -2.0
        %v1156 = vmul.f32 %v1140, -2.0
        %v1157 = vmul.f32 %v1141, -2.0
        %v1158 = vmul.f32 %v1142, 1.442695
        %v1159 = vpow.pop %v1158
        %v1160 = vmul.f32 %v1143, 1.442695
        %v1161 = vpow.pop %v1160
        %v1162 = vmul.f32 %v1144, 1.442695
        %v1163 = vpow.pop %v1162
        %v1164 = vmul.f32 %v1145, 1.442695
        %v1165 = vpow.pop %v1164
        %v1166 = vmul.f32 %v1146, 1.442695
        %v1167 = vpow.pop %v1166
        %v1168 = vmul.f32 %v1147, 1.442695
        %v1169 = vpow.pop %v1168
        %v1170 = vmul.f32 %v1148, 1.442695
        %v1171 = vpow.pop %v1170
        %v1172 = vmul.f32 %v1149, 1.442695
        %v1173 = vpow.pop %v1172
        %v1174 = vmul.f32 %v1150, 1.442695
        %v1175 = vpow.pop %v1174
        %v1176 = vmul.f32 %v1151, 1.442695
        %v1177 = vpow.pop %v1176
        %v1178 = vmul.f32 %v1152, 1.442695
        %v1179 = vpow.pop %v1178
        %v1180 = vmul.f32 %v1153, 1.442695
        %v1181 = vpow.pop %v1180
        %v1182 = vmul.f32 %v1154, 1.442695
        %v1183 = vpow.pop %v1182
        %v1184 = vmul.f32 %v1155, 1.442695
        %v1185 = vpow.pop %v1184
        %v1186 = vmul.f32 %v1156, 1.442695
        %v1187 = vpow.pop %v1186
        %v1188 = vmul.f32 %v1157, 1.442695
        %v1189 = vpow.pop %v1188
        %v1190 = vstv %s169
        %vm1191 = vcmp.lt.s32.totalorder %v188, %v1190
        %vm1192 = vcmp.lt.s32.totalorder %v189, %v1190
        %vm1193 = vcmp.lt.s32.totalorder %v190, %v1190
        %vm1194 = vcmp.lt.s32.totalorder %v191, %v1190
        %vm1195 = vcmp.lt.s32.totalorder %v192, %v1190
        %vm1196 = vcmp.lt.s32.totalorder %v193, %v1190
        %vm1197 = vcmp.lt.s32.totalorder %v194, %v1190
        %vm1198 = vcmp.lt.s32.totalorder %v195, %v1190
        %vm1199 = vcmp.lt.s32.totalorder %v196, %v1190
        %vm1200 = vcmp.lt.s32.totalorder %v197, %v1190
        %vm1201 = vcmp.lt.s32.totalorder %v198, %v1190
        %vm1202 = vcmp.lt.s32.totalorder %v199, %v1190
        %vm1203 = vcmp.lt.s32.totalorder %v200, %v1190
        %vm1204 = vcmp.lt.s32.totalorder %v201, %v1190
        %vm1205 = vcmp.lt.s32.totalorder %v202, %v1190
        %vm1206 = vcmp.lt.s32.totalorder %v203, %v1190
        %vm1207 = vcmp.lt.s32.totalorder %v205, %v1190
        %v1208 = vsel %vm1191, 1, 0
        %v1209 = vsel %vm1192, 1, 0
        %v1210 = vsel %vm1193, 1, 0
        %v1211 = vsel %vm1194, 1, 0
        %v1212 = vsel %vm1195, 1, 0
        %v1213 = vsel %vm1196, 1, 0
        %v1214 = vsel %vm1197, 1, 0
        %v1215 = vsel %vm1198, 1, 0
        %v1216 = vsel %vm1199, 1, 0
        %v1217 = vsel %vm1200, 1, 0
        %v1218 = vsel %vm1201, 1, 0
        %v1219 = vsel %vm1202, 1, 0
        %v1220 = vsel %vm1203, 1, 0
        %v1221 = vsel %vm1204, 1, 0
        %v1222 = vsel %vm1205, 1, 0
        %v1223 = vsel %vm1206, 1, 0
        %vm1224 = vcmp.eq.s32.totalorder %v1208, 1
        %vm1225 = vcmp.eq.s32.totalorder %v1209, 1
        %vm1226 = vcmp.eq.s32.totalorder %v1210, 1
        %vm1227 = vcmp.eq.s32.totalorder %v1211, 1
        %vm1228 = vcmp.eq.s32.totalorder %v1212, 1
        %vm1229 = vcmp.eq.s32.totalorder %v1213, 1
        %vm1230 = vcmp.eq.s32.totalorder %v1214, 1
        %vm1231 = vcmp.eq.s32.totalorder %v1215, 1
        %vm1232 = vcmp.eq.s32.totalorder %v1216, 1
        %vm1233 = vcmp.eq.s32.totalorder %v1217, 1
        %vm1234 = vcmp.eq.s32.totalorder %v1218, 1
        %vm1235 = vcmp.eq.s32.totalorder %v1219, 1
        %vm1236 = vcmp.eq.s32.totalorder %v1220, 1
        %vm1237 = vcmp.eq.s32.totalorder %v1221, 1
        %vm1238 = vcmp.eq.s32.totalorder %v1222, 1
        %vm1239 = vcmp.eq.s32.totalorder %v1223, 1
        %v1240 = vsel %vm1207, 1, 0
        %vm1241 = vcmp.eq.s32.totalorder %v1240, 1
        %vm1242 = vmand %vm1224, %vm1241
        %vm1243 = vmand %vm1225, %vm1241
        %vm1244 = vmand %vm1226, %vm1241
        %vm1245 = vmand %vm1227, %vm1241
        %vm1246 = vmand %vm1228, %vm1241
        %vm1247 = vmand %vm1229, %vm1241
        %vm1248 = vmand %vm1230, %vm1241
        %vm1249 = vmand %vm1231, %vm1241
        %vm1250 = vmand %vm1232, %vm1241
        %vm1251 = vmand %vm1233, %vm1241
        %vm1252 = vmand %vm1234, %vm1241
        %vm1253 = vmand %vm1235, %vm1241
        %vm1254 = vmand %vm1236, %vm1241
        %vm1255 = vmand %vm1237, %vm1241
        %vm1256 = vmand %vm1238, %vm1241
        %vm1257 = vmand %vm1239, %vm1241
        %v1258 = vsel %vm1191, 0.0001, 1.0
        %v1259 = vsel %vm1192, 0.0001, 1.0
        %v1260 = vsel %vm1193, 0.0001, 1.0
        %v1261 = vsel %vm1194, 0.0001, 1.0
        %v1262 = vsel %vm1195, 0.0001, 1.0
        %v1263 = vsel %vm1196, 0.0001, 1.0
        %v1264 = vsel %vm1197, 0.0001, 1.0
        %v1265 = vsel %vm1198, 0.0001, 1.0
        %v1266 = vsel %vm1199, 0.0001, 1.0
        %v1267 = vsel %vm1200, 0.0001, 1.0
        %v1268 = vsel %vm1201, 0.0001, 1.0
        %v1269 = vsel %vm1202, 0.0001, 1.0
        %v1270 = vsel %vm1203, 0.0001, 1.0
        %v1271 = vsel %vm1204, 0.0001, 1.0
        %v1272 = vsel %vm1205, 0.0001, 1.0
        %v1273 = vsel %vm1206, 0.0001, 1.0
        %v1274 = vsel %vm1242, %v1159, 0.0
        %v1275 = vsel %vm1243, %v1161, 0.0
        %v1276 = vsel %vm1244, %v1163, 0.0
        %v1277 = vsel %vm1245, %v1165, 0.0
        %v1278 = vsel %vm1246, %v1167, 0.0
        %v1279 = vsel %vm1247, %v1169, 0.0
        %v1280 = vsel %vm1248, %v1171, 0.0
        %v1281 = vsel %vm1249, %v1173, 0.0
        %v1282 = vsel %vm1250, %v1175, 0.0
        %v1283 = vsel %vm1251, %v1177, 0.0
        %v1284 = vsel %vm1252, %v1179, 0.0
        %v1285 = vsel %vm1253, %v1181, 0.0
        %v1286 = vsel %vm1254, %v1183, 0.0
        %v1287 = vsel %vm1255, %v1185, 0.0
        %v1288 = vsel %vm1256, %v1187, 0.0
        %v1289 = vsel %vm1257, %v1189, 0.0
        %v1290 = vsel %vm206, %v1258, 0.0
        %v1291 = vsel %vm207, %v1259, 0.0
        %v1292 = vsel %vm208, %v1260, 0.0
        %v1293 = vsel %vm209, %v1261, 0.0
        %v1294 = vsel %vm210, %v1262, 0.0
        %v1295 = vsel %vm211, %v1263, 0.0
        %v1296 = vsel %vm212, %v1264, 0.0
        %v1297 = vsel %vm213, %v1265, 0.0
        %v1298 = vsel %vm214, %v1266, 0.0
        %v1299 = vsel %vm215, %v1267, 0.0
        %v1300 = vsel %vm216, %v1268, 0.0
        %v1301 = vsel %vm217, %v1269, 0.0
        %v1302 = vsel %vm218, %v1270, 0.0
        %v1303 = vsel %vm219, %v1271, 0.0
        %v1304 = vsel %vm220, %v1272, 0.0
        %v1305 = vsel %vm221, %v1273, 0.0
        %v1306 = vadd.f32 %v1274, %v1290
        %v1307 = vadd.f32 %v1275, %v1291
        %v1308 = vadd.f32 %v1276, %v1292
        %v1309 = vadd.f32 %v1277, %v1293
        %v1310 = vadd.f32 %v1278, %v1294
        %v1311 = vadd.f32 %v1279, %v1295
        %v1312 = vadd.f32 %v1280, %v1296
        %v1313 = vadd.f32 %v1281, %v1297
        %v1314 = vadd.f32 %v1282, %v1298
        %v1315 = vadd.f32 %v1283, %v1299
        %v1316 = vadd.f32 %v1284, %v1300
        %v1317 = vadd.f32 %v1285, %v1301
        %v1318 = vadd.f32 %v1286, %v1302
        %v1319 = vadd.f32 %v1287, %v1303
        %v1320 = vadd.f32 %v1288, %v1304
        %v1321 = vadd.f32 %v1289, %v1305
        %1322 = vst [vmem:[#allocation2] sm:$0xff] %v1306
        %1323 = vst [vmem:[#allocation2 + $0x8] sm:$0xff] %v1307
        %1324 = vst [vmem:[#allocation2 + $0x10] sm:$0xff] %v1308
        %1325 = vst [vmem:[#allocation2 + $0x18] sm:$0xff] %v1309
        %1326 = vst [vmem:[#allocation2 + $0x20] sm:$0xff] %v1310
        %1327 = vst [vmem:[#allocation2 + $0x28] sm:$0xff] %v1311
        %1328 = vst [vmem:[#allocation2 + $0x30] sm:$0xff] %v1312
        %1329 = vst [vmem:[#allocation2 + $0x38] sm:$0xff] %v1313
        %1330 = vst [vmem:[#allocation2 + $0x40] sm:$0xff] %v1314
        %1331 = vst [vmem:[#allocation2 + $0x48] sm:$0xff] %v1315
        %1332 = vst [vmem:[#allocation2 + $0x50] sm:$0xff] %v1316
        %1333 = vst [vmem:[#allocation2 + $0x58] sm:$0xff] %v1317
        %1334 = vst [vmem:[#allocation2 + $0x60] sm:$0xff] %v1318
        %1335 = vst [vmem:[#allocation2 + $0x68] sm:$0xff] %v1319
        %1336 = vst [vmem:[#allocation2 + $0x70] sm:$0xff] %v1320
        %1337 = vst [vmem:[#allocation2 + $0x78] sm:$0xff] %v1321
        // While loop
        $region29: #{_gpdraw_fused_call.1} parent=27 // loop_pre_header
          _
        $region30: #{_gpdraw_fused_call.1} parent=27 // loop_header
          %s1339 = sphi 0, %s1341
          %p1340 = scmp.ge.s32.totalorder %s1339, %s169
          %v1344 = vphi 0.0, %v1567
        $region31: #{_gpdraw_fused_call.1} parent=27 // loop_header_branch
          %1343 = sbr.rel (%p1340) target = $region35
        $region32: #{_gpdraw_fused_call.1} parent=27 // loop_body
          %s1345 = scalar_lea.vmem [#allocation2], %s1339
          %v1346 = vld [vmem:[%s1345] sm:$0x1]
          %v1347 = vstv %s1339
          %vm1348 = vcmp.eq.s32.totalorder %v205, %v1347
          %v1349 = vsel %vm1348, %v1346, 0.0
          %vm1350 = vcmask 1040384
          %v1351 = vsel %vm1350, %v1349, 0.0
          %1352 = vadd.xlane.f32.xlu0 %v1351
          %v1353 = vpop.xlane.xlu0 %1352
          %v1354 = vmax.f32 %v1353, 1e-10
          %v1355 = vrsqrt.pop %v1354
          %v1356 = vmul.f32 %v1355, %v1354
          %v1357 = vmul.f32 %v1356, %v1355
          %v1358 = vmul.f32 0.5, %v1357
          %v1359 = vsub.f32 1.5, %v1358
          %v1360 = vmul.f32 %v1355, %v1359
          %vm1361 = vweird.f32 %v1354
          %vm1362 = vweird.f32 %v1355
          %vm1363 = vmor %vm1361, %vm1362
          %v1364 = vsel %vm1363, %v1355, %v1360
          %vm1365 = vcmp.ge.s32.totalorder %v205, %v1347
          %v1366 = vsel %vm1365, %v1346, 0.0
          %v1367 = vmul.f32 %v1366, %v1364
          %v1368 = vperm.slane %v1367, 0
          %1369 = vxpose.xlu0.b32.start [1/16] %v1368, 128
          %1370 = vxpose.xlu0.b32.cont [2/16] 0.0, 128
          %1371 = vxpose.xlu0.b32.cont [3/16] 0.0, 128
          %1372 = vxpose.xlu0.b32.cont [4/16] 0.0, 128
          %1373 = vxpose.xlu0.b32.cont [5/16] 0.0, 128
          %1374 = vxpose.xlu0.b32.cont [6/16] 0.0, 128
          %1375 = vxpose.xlu0.b32.cont [7/16] 0.0, 128
          %1376 = vxpose.xlu0.b32.cont [8/16] 0.0, 128
          %1377 = vxpose.xlu0.b32.cont [9/16] 0.0, 128
          %1378 = vxpose.xlu0.b32.cont [10/16] 0.0, 128
          %1379 = vxpose.xlu0.b32.cont [11/16] 0.0, 128
          %1380 = vxpose.xlu0.b32.cont [12/16] 0.0, 128
          %1381 = vxpose.xlu0.b32.cont [13/16] 0.0, 128
          %1382 = vxpose.xlu0.b32.cont [14/16] 0.0, 128
          %1383 = vxpose.xlu0.b32.cont [15/16] 0.0, 128
          %1384 = vxpose.xlu0.b32.end [16/16] 0.0, 128
          %v1385 = vpop.trf.xlu0
          %v1386 = vpop.trf.xlu0
          %v1387 = vpop.trf.xlu0
          %v1388 = vpop.trf.xlu0
          %v1389 = vpop.trf.xlu0
          %v1390 = vpop.trf.xlu0
          %v1391 = vpop.trf.xlu0
          %v1392 = vpop.trf.xlu0
          %v1393 = vpop.trf.xlu0
          %v1394 = vpop.trf.xlu0
          %v1395 = vpop.trf.xlu0
          %v1396 = vpop.trf.xlu0
          %v1397 = vpop.trf.xlu0
          %v1398 = vpop.trf.xlu0
          %v1399 = vpop.trf.xlu0
          %v1400 = vpop.trf.xlu0
          %p1401 = scmp.lt.s32.totalorder %s1339, 64
          %p1402 = scmp.gt.s32.totalorder %s169, 0
          %p1403 = pnand %p1401, %p1402
          %p1404 = pneg %p1403
          // Predicated region
          $region36: #{_gpdraw_fused_call.1} parent=32 // pred_check
            _
          $region37: #{_gpdraw_fused_call.1} parent=32 // pred_check_branch
            %1406 = sbr.rel (%p1403) target = $region39
          $region38: #{_gpdraw_fused_call.1} parent=32 // pred_region
            %v1407 = vld [vmem:[#allocation2] sm:$0xff]
            %v1408 = vld [vmem:[#allocation2 + $0x8] sm:$0xff]
            %v1409 = vld [vmem:[#allocation2 + $0x10] sm:$0xff]
            %v1410 = vld [vmem:[#allocation2 + $0x18] sm:$0xff]
            %v1411 = vld [vmem:[#allocation2 + $0x20] sm:$0xff]
            %v1412 = vld [vmem:[#allocation2 + $0x28] sm:$0xff]
            %v1413 = vld [vmem:[#allocation2 + $0x30] sm:$0xff]
            %v1414 = vld [vmem:[#allocation2 + $0x38] sm:$0xff]
            %1416 = vset.pattern.permute.xlu0 0
            %1417 = vperm.xlu0 %1416, %v1385
            %v1418 = vpop.permute.xlu0 %1417
            %1421 = vset.pattern.permute.xlu0 0
            %1422 = vperm.xlu0 %1421, %v1386
            %v1423 = vpop.permute.xlu0 %1422
            %1426 = vset.pattern.permute.xlu0 0
            %1427 = vperm.xlu0 %1426, %v1387
            %v1428 = vpop.permute.xlu0 %1427
            %1431 = vset.pattern.permute.xlu0 0
            %1432 = vperm.xlu0 %1431, %v1388
            %v1433 = vpop.permute.xlu0 %1432
            %1436 = vset.pattern.permute.xlu0 0
            %1437 = vperm.xlu0 %1436, %v1389
            %v1438 = vpop.permute.xlu0 %1437
            %1441 = vset.pattern.permute.xlu0 0
            %1442 = vperm.xlu0 %1441, %v1390
            %v1443 = vpop.permute.xlu0 %1442
            %1446 = vset.pattern.permute.xlu0 0
            %1447 = vperm.xlu0 %1446, %v1391
            %v1448 = vpop.permute.xlu0 %1447
            %1451 = vset.pattern.permute.xlu0 0
            %1452 = vperm.xlu0 %1451, %v1392
            %v1453 = vpop.permute.xlu0 %1452
            %v1455 = vmul.f32 %v1418, %v1368
            %v1456 = vmul.f32 %v1423, %v1368
            %v1457 = vmul.f32 %v1428, %v1368
            %v1458 = vmul.f32 %v1433, %v1368
            %v1459 = vmul.f32 %v1438, %v1368
            %v1460 = vmul.f32 %v1443, %v1368
            %v1461 = vmul.f32 %v1448, %v1368
            %v1462 = vmul.f32 %v1453, %v1368
            %v1463 = vsub.f32 %v1407, %v1455
            %v1464 = vsub.f32 %v1408, %v1456
            %v1465 = vsub.f32 %v1409, %v1457
            %v1466 = vsub.f32 %v1410, %v1458
            %v1467 = vsub.f32 %v1411, %v1459
            %v1468 = vsub.f32 %v1412, %v1460
            %v1469 = vsub.f32 %v1413, %v1461
            %v1470 = vsub.f32 %v1414, %v1462
            %1471 = vst [vmem:[#allocation2] sm:$0xff] %v1463
            %1472 = vst [vmem:[#allocation2 + $0x8] sm:$0xff] %v1464
            %1473 = vst [vmem:[#allocation2 + $0x10] sm:$0xff] %v1465
            %1474 = vst [vmem:[#allocation2 + $0x18] sm:$0xff] %v1466
            %1475 = vst [vmem:[#allocation2 + $0x20] sm:$0xff] %v1467
            %1476 = vst [vmem:[#allocation2 + $0x28] sm:$0xff] %v1468
            %1477 = vst [vmem:[#allocation2 + $0x30] sm:$0xff] %v1469
            %1478 = vst [vmem:[#allocation2 + $0x38] sm:$0xff] %v1470
          $region39: #{_gpdraw_fused_call.1} parent=32 // pred_fallthru
            _
          %p1479 = scmp.lt.s32.totalorder %s1339, 128
          %p1480 = scmp.gt.s32.totalorder %s169, 64
          %p1481 = pnand %p1479, %p1480
          %p1482 = pneg %p1481
          // Predicated region
          $region40: #{_gpdraw_fused_call.1} parent=32 // pred_check
            _
          $region41: #{_gpdraw_fused_call.1} parent=32 // pred_check_branch
            %1484 = sbr.rel (%p1481) target = $region43
          $region42: #{_gpdraw_fused_call.1} parent=32 // pred_region
            %v1485 = vld [vmem:[#allocation2 + $0x40] sm:$0xff]
            %v1486 = vld [vmem:[#allocation2 + $0x48] sm:$0xff]
            %v1487 = vld [vmem:[#allocation2 + $0x50] sm:$0xff]
            %v1488 = vld [vmem:[#allocation2 + $0x58] sm:$0xff]
            %v1489 = vld [vmem:[#allocation2 + $0x60] sm:$0xff]
            %v1490 = vld [vmem:[#allocation2 + $0x68] sm:$0xff]
            %v1491 = vld [vmem:[#allocation2 + $0x70] sm:$0xff]
            %v1492 = vld [vmem:[#allocation2 + $0x78] sm:$0xff]
            %1494 = vset.pattern.permute.xlu0 0
            %1495 = vperm.xlu0 %1494, %v1393
            %v1496 = vpop.permute.xlu0 %1495
            %1499 = vset.pattern.permute.xlu0 0
            %1500 = vperm.xlu0 %1499, %v1394
            %v1501 = vpop.permute.xlu0 %1500
            %1504 = vset.pattern.permute.xlu0 0
            %1505 = vperm.xlu0 %1504, %v1395
            %v1506 = vpop.permute.xlu0 %1505
            %1509 = vset.pattern.permute.xlu0 0
            %1510 = vperm.xlu0 %1509, %v1396
            %v1511 = vpop.permute.xlu0 %1510
            %1514 = vset.pattern.permute.xlu0 0
            %1515 = vperm.xlu0 %1514, %v1397
            %v1516 = vpop.permute.xlu0 %1515
            %1519 = vset.pattern.permute.xlu0 0
            %1520 = vperm.xlu0 %1519, %v1398
            %v1521 = vpop.permute.xlu0 %1520
            %1524 = vset.pattern.permute.xlu0 0
            %1525 = vperm.xlu0 %1524, %v1399
            %v1526 = vpop.permute.xlu0 %1525
            %1529 = vset.pattern.permute.xlu0 0
            %1530 = vperm.xlu0 %1529, %v1400
            %v1531 = vpop.permute.xlu0 %1530
            %v1533 = vmul.f32 %v1496, %v1368
            %v1534 = vmul.f32 %v1501, %v1368
            %v1535 = vmul.f32 %v1506, %v1368
            %v1536 = vmul.f32 %v1511, %v1368
            %v1537 = vmul.f32 %v1516, %v1368
            %v1538 = vmul.f32 %v1521, %v1368
            %v1539 = vmul.f32 %v1526, %v1368
            %v1540 = vmul.f32 %v1531, %v1368
            %v1541 = vsub.f32 %v1485, %v1533
            %v1542 = vsub.f32 %v1486, %v1534
            %v1543 = vsub.f32 %v1487, %v1535
            %v1544 = vsub.f32 %v1488, %v1536
            %v1545 = vsub.f32 %v1489, %v1537
            %v1546 = vsub.f32 %v1490, %v1538
            %v1547 = vsub.f32 %v1491, %v1539
            %v1548 = vsub.f32 %v1492, %v1540
            %1549 = vst [vmem:[#allocation2 + $0x40] sm:$0xff] %v1541
            %1550 = vst [vmem:[#allocation2 + $0x48] sm:$0xff] %v1542
            %1551 = vst [vmem:[#allocation2 + $0x50] sm:$0xff] %v1543
            %1552 = vst [vmem:[#allocation2 + $0x58] sm:$0xff] %v1544
            %1553 = vst [vmem:[#allocation2 + $0x60] sm:$0xff] %v1545
            %1554 = vst [vmem:[#allocation2 + $0x68] sm:$0xff] %v1546
            %1555 = vst [vmem:[#allocation2 + $0x70] sm:$0xff] %v1547
            %1556 = vst [vmem:[#allocation2 + $0x78] sm:$0xff] %v1548
          $region43: #{_gpdraw_fused_call.1} parent=32 // pred_fallthru
            _
          %s1557 = sshra.s32 %s1339, 7
          %s1558 = sand.u32 %s1339, 127
          %s1559 = sadd.s32 %s1557, %s27
          %s1560 = smul.u32 %s1559, 128
          %s1561 = sshra.s32 %s1339, 7
          %s1562 = sand.u32 %s1339, 127
          %s1563 = sadd.s32 %s1560, %s1562
          %s1564 = sld [smem:[#allocation5 + %s1563]]
          %v1565 = vstv %s1564
          %v1566 = vmul.f32 %v1367, %v1565
          %v1567 = vadd.f32 %v1344, %v1566
        $region33: #{_gpdraw_fused_call.1} parent=27 // loop_footer
          %s1341 = sadd.s32 %s1339, 1
        $region34: #{_gpdraw_fused_call.1} parent=27 // loop_footer_branch
          %1338 = sbr.rel target = $region30
        $region35: #{_gpdraw_fused_call.1} parent=27 // loop_exit
          _
        %v1568 = vadd.f32 %v1344, 0.25
        %v1569 = vsel %vm1207, %v1568, 0.0
        %1570 = vst [vmem:[%s159] sm:$0x1] %v1569
        %s1571 = sand.u32 %s87, 1
        %s1572 = scalar_lea.sflag [#allocation7], %s1571
        %s1573 = sand.u32 %s87, 1
        %s1574 = scalar_lea.vmem [#allocation6], %s1573
        // Predicated region
        $region44: #{_gpdraw_fused_call.1} parent=27 // pred_check
          %p1575 = pneg %p97
        $region45: #{_gpdraw_fused_call.1} parent=27 // pred_check_branch
          %1577 = sbr.rel (%p1575) target = $region47
        $region46: #{_gpdraw_fused_call.1} parent=27 // pred_region
          %1579 = vsyncadd %s1572, 0
          %s1580 = scalar_lea.hbm %s4, %s27
          %s1582 = sshll.u32 %s1574, 4
          %s1583 = int_to_ptr.vmem [resolvable:$true] %s1582
          %s1584 = sshll.u32 %s1580, 4
          %s1585 = int_to_ptr.hbm [resolvable:$true] %s1584
          %1587 = dma.vmem_to_hbm [thread:$0]  %s1583, 16, %s1585, %s1572
        $region47: #{_gpdraw_fused_call.1} parent=27 // pred_fallthru
          _
      $region28: #{_gpdraw_fused_call.1} parent=5 // pred_fallthru
        _
      %p1588 = scmp.le.s32.totalorder 2, %s22
      // Predicated region
      $region48: #{_gpdraw_fused_call.1} parent=5 // pred_check
        %p1589 = pneg %p1588
      $region49: #{_gpdraw_fused_call.1} parent=5 // pred_check_branch
        %1591 = sbr.rel (%p1589) target = $region51
      $region50: #{_gpdraw_fused_call.1} parent=5 // pred_region
        %s1592 = ssub.s32 %s22, 2
        // Predicated region
        $region52: #{_gpdraw_fused_call.1} parent=50 // pred_check
          %p1593 = pneg %p103
        $region53: #{_gpdraw_fused_call.1} parent=50 // pred_check_branch
          %1595 = sbr.rel (%p1593) target = $region55
        $region54: #{_gpdraw_fused_call.1} parent=50 // pred_region
          %s1596 = sand.u32 %s88, 1
          %s1597 = scalar_lea.sflag [#allocation7], %s1596
          %s1598 = sand.u32 %s88, 1
          %s1599 = scalar_lea.vmem [#allocation6], %s1598
          %1601 = dma.done %s1597, 16
        $region55: #{_gpdraw_fused_call.1} parent=50 // pred_fallthru
          _
      $region51: #{_gpdraw_fused_call.1} parent=5 // pred_fallthru
        _
    $region6: #{_gpdraw_fused_call.1} parent=1 // loop_footer
      %s26 = sadd.s32 1, %s22
    $region7: #{_gpdraw_fused_call.1} parent=1 // loop_footer_branch
      %21 = sbr.rel target = $region3
    $region8: #{_gpdraw_fused_call.1} parent=1 // loop_exit
      _
    %1602 = vsyncpa [#allocation7], 1
    %s1603 = scalar_lea.sflag [#allocation7], 1
    %1604 = vsyncpa %s1603, 1

</llo_original>
